<compile_context>
chip_gen: v7x
topology: tpu7x:2x2x1
jax: 0.10.0
libtpu: 0.0.40
codegen_flags: <defaults>
</compile_context>

<pallas_src>
import functools

import jax
import jax.numpy as jnp
from jax import lax
from jax.experimental import pallas as pl
from jax.experimental.pallas import tpu as pltpu

EPS = 1e-5  # PyTorch nn.LayerNorm default


def _layernorm(x, w, b):
    mu = jnp.mean(x, axis=-1, keepdims=True)
    var = jnp.mean((x - mu) ** 2, axis=-1, keepdims=True)
    return (x - mu) * lax.rsqrt(var + EPS) * w + b


# ----------------------------- fused Pallas kernel -------------------------- #

def fused_text_transformer_kernel(
        x0_ref,            # (B*S, D) f32  pre-normed embeddings
        vec_ref,           # (6, D)   f32  [ln1_w, ln1_b, bo, ln2_w, ln2_b, b2]
        wqkv_ref,          # (D, 3D)  bf16 fused QKV weight (scale folded into Q part)
        bqkv_ref,          # (1, 3D)  f32  fused QKV bias   (scale folded into Q part)
        wo_ref,            # (D, D)   bf16
        w1_ref,            # (D, Dff) bf16
        b1_ref,            # (1, Dff) f32
        w2_ref,            # (Dff, D) bf16
        o_ref,             # (B*S, D) f32  resident residual stream
        *, num_heads, batch, seq):
    """One grid step == one encoder layer; o_ref carries the residual stream."""
    l = pl.program_id(0)
    bf16 = jnp.bfloat16
    H = num_heads

    # seed the residual stream once (pre-LN already applied in the wrapper)
    @pl.when(l == 0)
    def _():
        o_ref[...] = x0_ref[...]

    x = o_ref[...]                               # (n, D) f32
    n, d = x.shape
    dh = d // H

    # packed per-layer vectors (sublane row slices, all (1, D))
    ln1w = vec_ref[0:1, :]
    ln1b = vec_ref[1:2, :]
    bo   = vec_ref[2:3, :]
    ln2w = vec_ref[3:4, :]
    ln2b = vec_ref[4:5, :]
    b2   = vec_ref[5:6, :]

    # ---- self-attention sublayer: x = x + MHA(LN1(x)) ----
    h = _layernorm(x, ln1w, ln1b).astype(bf16)
    # one fused QKV matmul: (n, D) @ (D, 3D) -> (n, 3D), f32 accumulation
    qkv = jnp.dot(h, wqkv_ref[...], preferred_element_type=jnp.float32) + bqkv_ref[...]

    def split_heads(off):
        # static lane slices -> stack heads on a new leading axis -> (H*B, S, dh)
        parts = [qkv[:, off + i * dh: off + (i + 1) * dh] for i in range(H)]
        t = jnp.stack(parts, axis=0)             # (H, n, dh)
        return t.reshape(H * batch, seq, dh).astype(bf16)

    qb = split_heads(0)                          # scale already folded into Wq/bq
    kb = split_heads(d)
    vb = split_heads(2 * d)

    s = jnp.einsum('bqd,bkd->bqk', qb, kb,
                   preferred_element_type=jnp.float32)            # (H*B, S, S) f32

    # softmax on a 2-D (H*B*S, S) view (leading-axis-only merge, layout preserving)
    s2 = s.reshape(H * batch * seq, seq)
    s2 = s2 - jnp.max(s2, axis=-1, keepdims=True)
    p2 = jnp.exp(s2)
    p2 = p2 * pl.reciprocal(jnp.sum(p2, axis=-1, keepdims=True), approx=True)
    p = p2.reshape(H * batch, seq, seq).astype(bf16)

    ctx = jnp.einsum('bqk,bkd->bqd', p, vb,
                     preferred_element_type=jnp.float32)          # (H*B, S, dh) f32

    # concat heads back onto the lane axis -> single (n, D) @ (D, D) output projection
    ctx = ctx.reshape(H, n, dh)
    ctx_cat = jnp.concatenate([ctx[i] for i in range(H)], axis=-1).astype(bf16)  # (n, D)
    attn = jnp.dot(ctx_cat, wo_ref[...], preferred_element_type=jnp.float32) + bo
    x = x + attn

    # ---- MLP sublayer: x = x + W2(relu(W1(LN2(x)))) ; dropout = identity ----
    h2 = _layernorm(x, ln2w, ln2b).astype(bf16)
    f = jnp.dot(h2, w1_ref[...], preferred_element_type=jnp.float32) + b1_ref[...]
    f = jnp.maximum(f, 0.0).astype(bf16)          # ReLU in f32-accum then cast (v5e-safe)
    f = jnp.dot(f, w2_ref[...], preferred_element_type=jnp.float32) + b2
    o_ref[...] = x + f


# ----------------------------- pallas_call wrapper -------------------------- #

def fused_encoder(x0, params, num_heads, batch, seq):
    BS, D = x0.shape
    L = params["wq"].shape[0]
    H = num_heads
    dh = D // H
    Dff = params["w1"].shape[-1]
    bf16 = jnp.bfloat16
    scale = 1.0 / (dh ** 0.5)

    # ---- host-side layout plumbing ----
    # fold attention scale into Wq and bq (exact: reference scales q after bias add),
    # fuse QKV weights/biases, cast matmul weights to bf16.
    wqkv = jnp.concatenate(
        [params["wq"] * scale, params["wk"], params["wv"]], axis=-1).astype(bf16)   # (L, D, 3D)
    bqkv = jnp.concatenate(
        [params["bq"] * scale, params["bk"], params["bv"]], axis=-1)                # (L, 1, 3D) f32
    wo = params["wo"].astype(bf16)                                                  # (L, D, D)
    w1 = params["w1"].astype(bf16)                                                  # (L, D, Dff)
    w2 = params["w2"].astype(bf16)                                                  # (L, Dff, D)
    b1 = params["b1"]                                                               # (L, 1, Dff)
    # pack the six D-wide per-layer vectors into one tensor (one DMA instead of six)
    vecs = jnp.concatenate(
        [params["ln1_w"], params["ln1_b"], params["bo"],
         params["ln2_w"], params["ln2_b"], params["b2"]], axis=1)                   # (L, 6, D)

    def fixed(shape):
        nd = len(shape)
        return pl.BlockSpec(shape, lambda l: (0,) * nd)

    def per_layer(shape):
        nd = len(shape)
        return pl.BlockSpec((None,) + shape, lambda l: (l,) + (0,) * nd)

    kern = functools.partial(fused_text_transformer_kernel,
                             num_heads=H, batch=batch, seq=seq)

    return pl.pallas_call(
        kern,
        out_shape=jax.ShapeDtypeStruct((BS, D), jnp.float32),
        grid=(L,),
        in_specs=[
            fixed((BS, D)),            # x0 (constant block index -> DMA'd once)
            per_layer((6, D)),         # packed vectors
            per_layer((D, 3 * D)),     # fused QKV weight
            per_layer((1, 3 * D)),     # fused QKV bias
            per_layer((D, D)),         # Wo
            per_layer((D, Dff)),       # W1
            per_layer((1, Dff)),       # b1
            per_layer((Dff, D)),       # W2
        ],
        out_specs=fixed((BS, D)),
        compiler_params=pltpu.CompilerParams(dimension_semantics=("arbitrary",)),
    )(x0, vecs, wqkv, bqkv, wo, w1, b1, w2)


@functools.partial(jax.jit, static_argnames=("num_heads",))
def text_transformer_forward(params, input_ids, num_heads):
    B, S = input_ids.shape
    D = params["tok_emb"].shape[1]
    # embedding gather + pos add + one-off pre-LN stay in plain JAX (XLA fuses them)
    tok = params["tok_emb"][input_ids]                       # (B, S, D)
    x = tok + params["pos_emb"][:S][None]
    mu = x.mean(-1, keepdims=True)
    var = ((x - mu) ** 2).mean(-1, keepdims=True)
    x = (x - mu) * lax.rsqrt(var + EPS) * params["pre_w"] + params["pre_b"]
    x0 = x.reshape(B * S, D).astype(jnp.float32)
    x = fused_encoder(x0, params, num_heads, B, S)           # (B*S, D)
    return x.reshape(B, S, D)[:, 0]                          # cls_output


# ----------------------------- parameter init ------------------------------- #

def _xavier(key, shape):
    bound = (6.0 / (shape[0] + shape[1])) ** 0.5
    return jax.random.uniform(key, shape, jnp.float32, -bound, bound)


def init_params(key, vocab, max_seq, num_layers, D, Dff):
    keys = jax.random.split(key, 2 + num_layers)
    params = {
        "tok_emb": _xavier(keys[0], (vocab, D)),
        "pos_emb": _xavier(keys[1], (max_seq, D)),
        "pre_w": jnp.ones((1, D), jnp.float32),
        "pre_b": jnp.zeros((1, D), jnp.float32),
    }
    wq, wk, wv, wo, w1, w2 = [], [], [], [], [], []
    for l in range(num_layers):
        lk = jax.random.split(keys[2 + l], 6)
        wq.append(_xavier(lk[0], (D, D)))       # stored pre-transposed: q = h @ wq
        wk.append(_xavier(lk[1], (D, D)))
        wv.append(_xavier(lk[2], (D, D)))
        wo.append(_xavier(lk[3], (D, D)))       # attn = ctx @ wo
        w1.append(_xavier(lk[4], (D, Dff)))     # f = h2 @ w1
        w2.append(_xavier(lk[5], (Dff, D)))     # out = f @ w2
    L = num_layers
    params.update({
        "ln1_w": jnp.ones((L, 1, D), jnp.float32), "ln1_b": jnp.zeros((L, 1, D), jnp.float32),
        "wq": jnp.stack(wq), "wk": jnp.stack(wk), "wv": jnp.stack(wv),
        "bq": jnp.zeros((L, 1, D), jnp.float32),
        "bk": jnp.zeros((L, 1, D), jnp.float32),
        "bv": jnp.zeros((L, 1, D), jnp.float32),
        "wo": jnp.stack(wo), "bo": jnp.zeros((L, 1, D), jnp.float32),
        "ln2_w": jnp.ones((L, 1, D), jnp.float32), "ln2_b": jnp.zeros((L, 1, D), jnp.float32),
        "w1": jnp.stack(w1), "b1": jnp.zeros((L, 1, Dff), jnp.float32),
        "w2": jnp.stack(w2), "b2": jnp.zeros((L, 1, D), jnp.float32),
    })
    return params


# ----------------------------- pure-JAX f32 reference ----------------------- #

def ref_forward(params, input_ids, num_heads):
    def ln(x, w, b):
        mu = x.mean(-1, keepdims=True)
        var = ((x - mu) ** 2).mean(-1, keepdims=True)
        return (x - mu) / jnp.sqrt(var + EPS) * w + b

    B, S = input_ids.shape
    D = params["tok_emb"].shape[1]
    dh = D // num_heads
    x = params["tok_emb"][input_ids] + params["pos_emb"][:S][None]
    x = ln(x, params["pre_w"], params["pre_b"])
    L = params["wq"].shape[0]
    for l in range(L):
        h = ln(x, params["ln1_w"][l], params["ln1_b"][l])
        q = h @ params["wq"][l] + params["bq"][l]
        k = h @ params["wk"][l] + params["bk"][l]
        v = h @ params["wv"][l] + params["bv"][l]
        q = q.reshape(B, S, num_heads, dh).transpose(0, 2, 1, 3) / (dh ** 0.5)
        k = k.reshape(B, S, num_heads, dh).transpose(0, 2, 1, 3)
        v = v.reshape(B, S, num_heads, dh).transpose(0, 2, 1, 3)
        s = q @ k.transpose(0, 1, 3, 2)
        p = jax.nn.softmax(s, axis=-1)
        ctx = (p @ v).transpose(0, 2, 1, 3).reshape(B, S, D)
        x = x + ctx @ params["wo"][l] + params["bo"][l]
        h2 = ln(x, params["ln2_w"][l], params["ln2_b"][l])
        f = jnp.maximum(h2 @ params["w1"][l] + params["b1"][l], 0.0)
        x = x + f @ params["w2"][l] + params["b2"][l]
    return x[:, 0]


# ----------------------------------- main ----------------------------------- #

if __name__ == "__main__":
    # Small config consistent with the module's structure.
    VOCAB, MAX_SEQ, LAYERS, HEADS, D, DFF = 64, 16, 2, 4, 64, 128
    B, S = 2, 8

    key = jax.random.PRNGKey(0)
    pkey, ikey = jax.random.split(key)
    params = init_params(pkey, VOCAB, MAX_SEQ, LAYERS, D, DFF)
    input_ids = jax.random.randint(ikey, (B, S), 0, VOCAB, dtype=jnp.int32)

    out = text_transformer_forward(params, input_ids, num_heads=HEADS)
    out = jax.block_until_ready(out)

    assert out.shape == (B, D)
    assert bool(jnp.all(jnp.isfinite(out)))

    ref = ref_forward(params, input_ids, HEADS)
    max_err = float(jnp.max(jnp.abs(out - ref)))
    # bf16 MXU operands (f32 accumulation) + approx softmax reciprocal -> loose tolerance.
    assert jnp.allclose(out, ref, atol=4e-2, rtol=4e-2), f"max_err={max_err}"

    print("KERNEL_OK")
</pallas_src>

<mosaic_0001>
module attributes {stable_mosaic.version = 11 : i64} {
  func.func @fused_text_transformer_kernel(%arg0: i32, %arg1: memref<16x64xf32, #tpu.memory_space<vmem>>, %arg2: memref<1x6x64xf32, #tpu.memory_space<vmem>>, %arg3: memref<1x64x192xbf16, #tpu.memory_space<vmem>>, %arg4: memref<1x1x192xf32, #tpu.memory_space<vmem>>, %arg5: memref<1x64x64xbf16, #tpu.memory_space<vmem>>, %arg6: memref<1x64x128xbf16, #tpu.memory_space<vmem>>, %arg7: memref<1x1x128xf32, #tpu.memory_space<vmem>>, %arg8: memref<1x128x64xbf16, #tpu.memory_space<vmem>>, %arg9: memref<16x64xf32, #tpu.memory_space<vmem>>) attributes {dimension_semantics = [#tpu.dimension_semantics<arbitrary>], iteration_bounds = array<i64: 2>, scalar_prefetch = 0 : i64, scratch_operands = 0 : i64, tpu.core_type = #tpu.core_type<tc>, window_params = [{pipeline_mode = #tpu.pipeline_mode<synchronous>, transform_indices = @transform_0, window_bounds = array<i64: 16, 64>}, {transform_indices = @transform_1, window_bounds = array<i64: 1, 6, 64>}, {transform_indices = @transform_2, window_bounds = array<i64: 1, 64, 192>}, {transform_indices = @transform_3, window_bounds = array<i64: 1, 1, 192>}, {transform_indices = @transform_4, window_bounds = array<i64: 1, 64, 64>}, {transform_indices = @transform_5, window_bounds = array<i64: 1, 64, 128>}, {transform_indices = @transform_6, window_bounds = array<i64: 1, 1, 128>}, {transform_indices = @transform_7, window_bounds = array<i64: 1, 128, 64>}, {pipeline_mode = #tpu.pipeline_mode<synchronous>, transform_indices = @transform_8, window_bounds = array<i64: 16, 64>}]} {
    %c0_i32 = arith.constant 0 : i32
    %0 = arith.cmpi eq, %arg0, %c0_i32 : i32
    %1 = arith.extui %0 : i1 to i32
    %c0_i32_0 = arith.constant 0 : i32
    %2 = arith.cmpi ne, %1, %c0_i32_0 : i32
    scf.if %2 {
      %c0_53 = arith.constant 0 : index
      %c0_54 = arith.constant 0 : index
      %151 = vector.load %arg1[%c0_53, %c0_54] : memref<16x64xf32, #tpu.memory_space<vmem>>, vector<16x64xf32>
      %c0_55 = arith.constant 0 : index
      %c0_56 = arith.constant 0 : index
      %152 = vector.load %arg9[%c0_55, %c0_56] : memref<16x64xf32, #tpu.memory_space<vmem>>, vector<16x64xf32>
      tpu.vector_store %arg9[%c0_55, %c0_56], %151 {strides = array<i32>} : memref<16x64xf32, #tpu.memory_space<vmem>>, vector<16x64xf32>,
    } else {
    }
    %c0 = arith.constant 0 : index
    %c0_1 = arith.constant 0 : index
    %3 = vector.load %arg9[%c0, %c0_1] : memref<16x64xf32, #tpu.memory_space<vmem>>, vector<16x64xf32>
    %c0_2 = arith.constant 0 : index
    %c0_3 = arith.constant 0 : index
    %c0_4 = arith.constant 0 : index
    %4 = vector.load %arg2[%c0_2, %c0_3, %c0_4] : memref<1x6x64xf32, #tpu.memory_space<vmem>>, vector<1x1x64xf32>
    %5 = vector.shape_cast %4 : vector<1x1x64xf32> to vector<1x64xf32>
    %c0_5 = arith.constant 0 : index
    %c1 = arith.constant 1 : index
    %c0_6 = arith.constant 0 : index
    %6 = vector.load %arg2[%c0_5, %c1, %c0_6] : memref<1x6x64xf32, #tpu.memory_space<vmem>>, vector<1x1x64xf32>
    %7 = vector.shape_cast %6 : vector<1x1x64xf32> to vector<1x64xf32>
    %c0_7 = arith.constant 0 : index
    %c2 = arith.constant 2 : index
    %c0_8 = arith.constant 0 : index
    %8 = vector.load %arg2[%c0_7, %c2, %c0_8] : memref<1x6x64xf32, #tpu.memory_space<vmem>>, vector<1x1x64xf32>
    %9 = vector.shape_cast %8 : vector<1x1x64xf32> to vector<1x64xf32>
    %c0_9 = arith.constant 0 : index
    %c3 = arith.constant 3 : index
    %c0_10 = arith.constant 0 : index
    %10 = vector.load %arg2[%c0_9, %c3, %c0_10] : memref<1x6x64xf32, #tpu.memory_space<vmem>>, vector<1x1x64xf32>
    %11 = vector.shape_cast %10 : vector<1x1x64xf32> to vector<1x64xf32>
    %c0_11 = arith.constant 0 : index
    %c4 = arith.constant 4 : index
    %c0_12 = arith.constant 0 : index
    %12 = vector.load %arg2[%c0_11, %c4, %c0_12] : memref<1x6x64xf32, #tpu.memory_space<vmem>>, vector<1x1x64xf32>
    %13 = vector.shape_cast %12 : vector<1x1x64xf32> to vector<1x64xf32>
    %c0_13 = arith.constant 0 : index
    %c5 = arith.constant 5 : index
    %c0_14 = arith.constant 0 : index
    %14 = vector.load %arg2[%c0_13, %c5, %c0_14] : memref<1x6x64xf32, #tpu.memory_space<vmem>>, vector<1x1x64xf32>
    %15 = vector.shape_cast %14 : vector<1x1x64xf32> to vector<1x64xf32>
    %cst = arith.constant dense<0.000000e+00> : vector<16xf32>
    %16 = vector.multi_reduction <add>, %3, %cst [1] : vector<16x64xf32> to vector<16xf32>
    %17 = vector.shape_cast %16 : vector<16xf32> to vector<16x1xf32>
    %cst_15 = arith.constant 6.400000e+01 : f32
    %18 = vector.broadcast %cst_15 : f32 to vector<16x1xf32>
    %19 = arith.divf %17, %18 : vector<16x1xf32>
    %20 = vector.broadcast %19 : vector<16x1xf32> to vector<16x64xf32>
    %21 = arith.subf %3, %20 : vector<16x64xf32>
    %22 = arith.mulf %21, %21 : vector<16x64xf32>
    %cst_16 = arith.constant dense<0.000000e+00> : vector<16xf32>
    %23 = vector.multi_reduction <add>, %22, %cst_16 [1] : vector<16x64xf32> to vector<16xf32>
    %24 = vector.shape_cast %23 : vector<16xf32> to vector<16x1xf32>
    %cst_17 = arith.constant 6.400000e+01 : f32
    %25 = vector.broadcast %cst_17 : f32 to vector<16x1xf32>
    %26 = arith.divf %24, %25 : vector<16x1xf32>
    %27 = vector.broadcast %19 : vector<16x1xf32> to vector<16x64xf32>
    %28 = arith.subf %3, %27 : vector<16x64xf32>
    %cst_18 = arith.constant 9.99999974E-6 : f32
    %29 = vector.broadcast %cst_18 : f32 to vector<16x1xf32>
    %30 = arith.addf %26, %29 : vector<16x1xf32>
    %31 = math.rsqrt %30 : vector<16x1xf32>
    %32 = vector.broadcast %31 : vector<16x1xf32> to vector<16x64xf32>
    %33 = arith.mulf %28, %32 : vector<16x64xf32>
    %34 = vector.broadcast %5 : vector<1x64xf32> to vector<16x64xf32>
    %35 = arith.mulf %33, %34 : vector<16x64xf32>
    %36 = vector.broadcast %7 : vector<1x64xf32> to vector<16x64xf32>
    %37 = arith.addf %35, %36 : vector<16x64xf32>
    %38 = arith.truncf %37 : vector<16x64xf32> to vector<16x64xbf16>
    %c0_19 = arith.constant 0 : index
    %c0_20 = arith.constant 0 : index
    %c0_21 = arith.constant 0 : index
    %39 = vector.load %arg3[%c0_19, %c0_20, %c0_21] : memref<1x64x192xbf16, #tpu.memory_space<vmem>>, vector<1x64x192xbf16>
    %40 = vector.shape_cast %39 : vector<1x64x192xbf16> to vector<64x192xbf16>
    %cst_22 = arith.constant dense<0.000000e+00> : vector<16x192xf32>
    %41 = tpu.matmul %38, %40, %cst_22 {dimension_numbers = #tpu.dot_dimension_numbers<[1], [0], [0], [1], [0, 0, 1, 1], [], []>} : vector<16x64xbf16>, vector<64x192xbf16>, vector<16x192xf32> -> vector<16x192xf32>
    %c0_23 = arith.constant 0 : index
    %c0_24 = arith.constant 0 : index
    %c0_25 = arith.constant 0 : index
    %42 = vector.load %arg4[%c0_23, %c0_24, %c0_25] : memref<1x1x192xf32, #tpu.memory_space<vmem>>, vector<1x1x192xf32>
    %43 = vector.shape_cast %42 : vector<1x1x192xf32> to vector<1x192xf32>
    %44 = vector.broadcast %43 : vector<1x192xf32> to vector<16x192xf32>
    %45 = arith.addf %41, %44 : vector<16x192xf32>
    %46 = vector.extract_strided_slice %45 {offsets = [0, 0], sizes = [16, 16], strides = [1, 1]} : vector<16x192xf32> to vector<16x16xf32>
    %47 = vector.extract_strided_slice %45 {offsets = [0, 16], sizes = [16, 16], strides = [1, 1]} : vector<16x192xf32> to vector<16x16xf32>
    %48 = vector.extract_strided_slice %45 {offsets = [0, 32], sizes = [16, 16], strides = [1, 1]} : vector<16x192xf32> to vector<16x16xf32>
    %49 = vector.extract_strided_slice %45 {offsets = [0, 48], sizes = [16, 16], strides = [1, 1]} : vector<16x192xf32> to vector<16x16xf32>
    %50 = vector.shape_cast %46 : vector<16x16xf32> to vector<1x16x16xf32>
    %51 = vector.shape_cast %47 : vector<16x16xf32> to vector<1x16x16xf32>
    %52 = vector.shape_cast %48 : vector<16x16xf32> to vector<1x16x16xf32>
    %53 = vector.shape_cast %49 : vector<16x16xf32> to vector<1x16x16xf32>
    %54 = tpu.concatenate %50, %51, %52, %53 in 0 : vector<1x16x16xf32>, vector<1x16x16xf32>, vector<1x16x16xf32>, vector<1x16x16xf32> -> vector<4x16x16xf32>
    %55 = vector.shape_cast %54 : vector<4x16x16xf32> to vector<8x8x16xf32>
    %56 = arith.truncf %55 : vector<8x8x16xf32> to vector<8x8x16xbf16>
    %57 = vector.extract_strided_slice %45 {offsets = [0, 64], sizes = [16, 16], strides = [1, 1]} : vector<16x192xf32> to vector<16x16xf32>
    %58 = vector.extract_strided_slice %45 {offsets = [0, 80], sizes = [16, 16], strides = [1, 1]} : vector<16x192xf32> to vector<16x16xf32>
    %59 = vector.extract_strided_slice %45 {offsets = [0, 96], sizes = [16, 16], strides = [1, 1]} : vector<16x192xf32> to vector<16x16xf32>
    %60 = vector.extract_strided_slice %45 {offsets = [0, 112], sizes = [16, 16], strides = [1, 1]} : vector<16x192xf32> to vector<16x16xf32>
    %61 = vector.shape_cast %57 : vector<16x16xf32> to vector<1x16x16xf32>
    %62 = vector.shape_cast %58 : vector<16x16xf32> to vector<1x16x16xf32>
    %63 = vector.shape_cast %59 : vector<16x16xf32> to vector<1x16x16xf32>
    %64 = vector.shape_cast %60 : vector<16x16xf32> to vector<1x16x16xf32>
    %65 = tpu.concatenate %61, %62, %63, %64 in 0 : vector<1x16x16xf32>, vector<1x16x16xf32>, vector<1x16x16xf32>, vector<1x16x16xf32> -> vector<4x16x16xf32>
    %66 = vector.shape_cast %65 : vector<4x16x16xf32> to vector<8x8x16xf32>
    %67 = arith.truncf %66 : vector<8x8x16xf32> to vector<8x8x16xbf16>
    %68 = vector.extract_strided_slice %45 {offsets = [0, 128], sizes = [16, 16], strides = [1, 1]} : vector<16x192xf32> to vector<16x16xf32>
    %69 = vector.extract_strided_slice %45 {offsets = [0, 144], sizes = [16, 16], strides = [1, 1]} : vector<16x192xf32> to vector<16x16xf32>
    %70 = vector.extract_strided_slice %45 {offsets = [0, 160], sizes = [16, 16], strides = [1, 1]} : vector<16x192xf32> to vector<16x16xf32>
    %71 = vector.extract_strided_slice %45 {offsets = [0, 176], sizes = [16, 16], strides = [1, 1]} : vector<16x192xf32> to vector<16x16xf32>
    %72 = vector.shape_cast %68 : vector<16x16xf32> to vector<1x16x16xf32>
    %73 = vector.shape_cast %69 : vector<16x16xf32> to vector<1x16x16xf32>
    %74 = vector.shape_cast %70 : vector<16x16xf32> to vector<1x16x16xf32>
    %75 = vector.shape_cast %71 : vector<16x16xf32> to vector<1x16x16xf32>
    %76 = tpu.concatenate %72, %73, %74, %75 in 0 : vector<1x16x16xf32>, vector<1x16x16xf32>, vector<1x16x16xf32>, vector<1x16x16xf32> -> vector<4x16x16xf32>
    %77 = vector.shape_cast %76 : vector<4x16x16xf32> to vector<8x8x16xf32>
    %78 = arith.truncf %77 : vector<8x8x16xf32> to vector<8x8x16xbf16>
    "tpu.trace_start"() <{level = 10 : i32, message = "bqd,bkd->bqk"}> : () -> ()
    %cst_26 = arith.constant dense<0.000000e+00> : vector<8x8x8xf32>
    %79 = tpu.matmul %56, %67, %cst_26 {dimension_numbers = #tpu.dot_dimension_numbers<[2], [2], [1], [1], [0, 0, 0, 1, 1, 1], [0], [0]>} : vector<8x8x16xbf16>, vector<8x8x16xbf16>, vector<8x8x8xf32> -> vector<8x8x8xf32>
    "tpu.trace_stop"() : () -> ()
    %80 = vector.shape_cast %79 : vector<8x8x8xf32> to vector<64x8xf32>
    %cst_27 = arith.constant dense<0xFF800000> : vector<64xf32>
    %81 = vector.multi_reduction <maximumf>, %80, %cst_27 [1] : vector<64x8xf32> to vector<64xf32>
    %82 = vector.shape_cast %81 : vector<64xf32> to vector<64x1xf32>
    %83 = vector.broadcast %82 : vector<64x1xf32> to vector<64x8xf32>
    %84 = arith.subf %80, %83 : vector<64x8xf32>
    %85 = math.exp %84 : vector<64x8xf32>
    %cst_28 = arith.constant dense<0.000000e+00> : vector<64xf32>
    %86 = vector.multi_reduction <add>, %85, %cst_28 [1] : vector<64x8xf32> to vector<64xf32>
    %87 = vector.shape_cast %86 : vector<64xf32> to vector<64x1xf32>
    %88 = tpu.reciprocal %87 {approx = true} : vector<64x1xf32> -> vector<64x1xf32>
    %89 = vector.broadcast %88 : vector<64x1xf32> to vector<64x8xf32>
    %90 = arith.mulf %85, %89 : vector<64x8xf32>
    %91 = vector.shape_cast %90 : vector<64x8xf32> to vector<8x8x8xf32>
    %92 = arith.truncf %91 : vector<8x8x8xf32> to vector<8x8x8xbf16>
    "tpu.trace_start"() <{level = 10 : i32, message = "bqk,bkd->bqd"}> : () -> ()
    %cst_29 = arith.constant dense<0.000000e+00> : vector<8x8x16xf32>
    %93 = tpu.matmul %92, %78, %cst_29 {dimension_numbers = #tpu.dot_dimension_numbers<[2], [1], [1], [2], [0, 0, 0, 1, 1, 2], [0], [0]>} : vector<8x8x8xbf16>, vector<8x8x16xbf16>, vector<8x8x16xf32> -> vector<8x8x16xf32>
    "tpu.trace_stop"() : () -> ()
    %94 = vector.shape_cast %93 : vector<8x8x16xf32> to vector<4x16x16xf32>
    %95 = vector.extract_strided_slice %94 {offsets = [0, 0, 0], sizes = [1, 16, 16], strides = [1, 1, 1]} : vector<4x16x16xf32> to vector<1x16x16xf32>
    %96 = vector.shape_cast %95 : vector<1x16x16xf32> to vector<16x16xf32>
    %97 = vector.extract_strided_slice %94 {offsets = [1, 0, 0], sizes = [1, 16, 16], strides = [1, 1, 1]} : vector<4x16x16xf32> to vector<1x16x16xf32>
    %98 = vector.shape_cast %97 : vector<1x16x16xf32> to vector<16x16xf32>
    %99 = vector.extract_strided_slice %94 {offsets = [2, 0, 0], sizes = [1, 16, 16], strides = [1, 1, 1]} : vector<4x16x16xf32> to vector<1x16x16xf32>
    %100 = vector.shape_cast %99 : vector<1x16x16xf32> to vector<16x16xf32>
    %101 = vector.extract_strided_slice %94 {offsets = [3, 0, 0], sizes = [1, 16, 16], strides = [1, 1, 1]} : vector<4x16x16xf32> to vector<1x16x16xf32>
    %102 = vector.shape_cast %101 : vector<1x16x16xf32> to vector<16x16xf32>
    %103 = tpu.concatenate %96, %98, %100, %102 in 1 : vector<16x16xf32>, vector<16x16xf32>, vector<16x16xf32>, vector<16x16xf32> -> vector<16x64xf32>
    %104 = arith.truncf %103 : vector<16x64xf32> to vector<16x64xbf16>
    %c0_30 = arith.constant 0 : index
    %c0_31 = arith.constant 0 : index
    %c0_32 = arith.constant 0 : index
    %105 = vector.load %arg5[%c0_30, %c0_31, %c0_32] : memref<1x64x64xbf16, #tpu.memory_space<vmem>>, vector<1x64x64xbf16>
    %106 = vector.shape_cast %105 : vector<1x64x64xbf16> to vector<64x64xbf16>
    %cst_33 = arith.constant dense<0.000000e+00> : vector<16x64xf32>
    %107 = tpu.matmul %104, %106, %cst_33 {dimension_numbers = #tpu.dot_dimension_numbers<[1], [0], [0], [1], [0, 0, 1, 1], [], []>} : vector<16x64xbf16>, vector<64x64xbf16>, vector<16x64xf32> -> vector<16x64xf32>
    %108 = vector.broadcast %9 : vector<1x64xf32> to vector<16x64xf32>
    %109 = arith.addf %107, %108 : vector<16x64xf32>
    %110 = arith.addf %3, %109 : vector<16x64xf32>
    %cst_34 = arith.constant dense<0.000000e+00> : vector<16xf32>
    %111 = vector.multi_reduction <add>, %110, %cst_34 [1] : vector<16x64xf32> to vector<16xf32>
    %112 = vector.shape_cast %111 : vector<16xf32> to vector<16x1xf32>
    %cst_35 = arith.constant 6.400000e+01 : f32
    %113 = vector.broadcast %cst_35 : f32 to vector<16x1xf32>
    %114 = arith.divf %112, %113 : vector<16x1xf32>
    %115 = vector.broadcast %114 : vector<16x1xf32> to vector<16x64xf32>
    %116 = arith.subf %110, %115 : vector<16x64xf32>
    %117 = arith.mulf %116, %116 : vector<16x64xf32>
    %cst_36 = arith.constant dense<0.000000e+00> : vector<16xf32>
    %118 = vector.multi_reduction <add>, %117, %cst_36 [1] : vector<16x64xf32> to vector<16xf32>
    %119 = vector.shape_cast %118 : vector<16xf32> to vector<16x1xf32>
    %cst_37 = arith.constant 6.400000e+01 : f32
    %120 = vector.broadcast %cst_37 : f32 to vector<16x1xf32>
    %121 = arith.divf %119, %120 : vector<16x1xf32>
    %122 = vector.broadcast %114 : vector<16x1xf32> to vector<16x64xf32>
    %123 = arith.subf %110, %122 : vector<16x64xf32>
    %cst_38 = arith.constant 9.99999974E-6 : f32
    %124 = vector.broadcast %cst_38 : f32 to vector<16x1xf32>
    %125 = arith.addf %121, %124 : vector<16x1xf32>
    %126 = math.rsqrt %125 : vector<16x1xf32>
    %127 = vector.broadcast %126 : vector<16x1xf32> to vector<16x64xf32>
    %128 = arith.mulf %123, %127 : vector<16x64xf32>
    %129 = vector.broadcast %11 : vector<1x64xf32> to vector<16x64xf32>
    %130 = arith.mulf %128, %129 : vector<16x64xf32>
    %131 = vector.broadcast %13 : vector<1x64xf32> to vector<16x64xf32>
    %132 = arith.addf %130, %131 : vector<16x64xf32>
    %133 = arith.truncf %132 : vector<16x64xf32> to vector<16x64xbf16>
    %c0_39 = arith.constant 0 : index
    %c0_40 = arith.constant 0 : index
    %c0_41 = arith.constant 0 : index
    %134 = vector.load %arg6[%c0_39, %c0_40, %c0_41] : memref<1x64x128xbf16, #tpu.memory_space<vmem>>, vector<1x64x128xbf16>
    %135 = vector.shape_cast %134 : vector<1x64x128xbf16> to vector<64x128xbf16>
    %cst_42 = arith.constant dense<0.000000e+00> : vector<16x128xf32>
    %136 = tpu.matmul %133, %135, %cst_42 {dimension_numbers = #tpu.dot_dimension_numbers<[1], [0], [0], [1], [0, 0, 1, 1], [], []>} : vector<16x64xbf16>, vector<64x128xbf16>, vector<16x128xf32> -> vector<16x128xf32>
    %c0_43 = arith.constant 0 : index
    %c0_44 = arith.constant 0 : index
    %c0_45 = arith.constant 0 : index
    %137 = vector.load %arg7[%c0_43, %c0_44, %c0_45] : memref<1x1x128xf32, #tpu.memory_space<vmem>>, vector<1x1x128xf32>
    %138 = vector.shape_cast %137 : vector<1x1x128xf32> to vector<1x128xf32>
    %139 = vector.broadcast %138 : vector<1x128xf32> to vector<16x128xf32>
    %140 = arith.addf %136, %139 : vector<16x128xf32>
    %cst_46 = arith.constant 0.000000e+00 : f32
    %141 = vector.broadcast %cst_46 : f32 to vector<16x128xf32>
    %142 = arith.maximumf %140, %141 : vector<16x128xf32>
    %143 = arith.truncf %142 : vector<16x128xf32> to vector<16x128xbf16>
    %c0_47 = arith.constant 0 : index
    %c0_48 = arith.constant 0 : index
    %c0_49 = arith.constant 0 : index
    %144 = vector.load %arg8[%c0_47, %c0_48, %c0_49] : memref<1x128x64xbf16, #tpu.memory_space<vmem>>, vector<1x128x64xbf16>
    %145 = vector.shape_cast %144 : vector<1x128x64xbf16> to vector<128x64xbf16>
    %cst_50 = arith.constant dense<0.000000e+00> : vector<16x64xf32>
    %146 = tpu.matmul %143, %145, %cst_50 {dimension_numbers = #tpu.dot_dimension_numbers<[1], [0], [0], [1], [0, 0, 1, 1], [], []>} : vector<16x128xbf16>, vector<128x64xbf16>, vector<16x64xf32> -> vector<16x64xf32>
    %147 = vector.broadcast %15 : vector<1x64xf32> to vector<16x64xf32>
    %148 = arith.addf %146, %147 : vector<16x64xf32>
    %149 = arith.addf %110, %148 : vector<16x64xf32>
    %c0_51 = arith.constant 0 : index
    %c0_52 = arith.constant 0 : index
    %150 = vector.load %arg9[%c0_51, %c0_52] : memref<16x64xf32, #tpu.memory_space<vmem>>, vector<16x64xf32>
    tpu.vector_store %arg9[%c0_51, %c0_52], %149 {strides = array<i32>} : memref<16x64xf32, #tpu.memory_space<vmem>>, vector<16x64xf32>,
    return
  }
  func.func @transform_0(%arg0: i32) -> (i32, i32) {
    %c0_i32 = arith.constant 0 : i32
    %c0_i32_0 = arith.constant 0 : i32
    %c0_i32_1 = arith.constant 0 : i32
    return %c0_i32, %c0_i32_0 : i32, i32
  }
  func.func @transform_1(%arg0: i32) -> (i32, i32, i32) {
    %c0_i32 = arith.constant 0 : i32
    %c0_i32_0 = arith.constant 0 : i32
    %c0_i32_1 = arith.constant 0 : i32
    return %arg0, %c0_i32, %c0_i32_0 : i32, i32, i32
  }
  func.func @transform_2(%arg0: i32) -> (i32, i32, i32) {
    %c0_i32 = arith.constant 0 : i32
    %c0_i32_0 = arith.constant 0 : i32
    %c0_i32_1 = arith.constant 0 : i32
    return %arg0, %c0_i32, %c0_i32_0 : i32, i32, i32
  }
  func.func @transform_3(%arg0: i32) -> (i32, i32, i32) {
    %c0_i32 = arith.constant 0 : i32
    %c0_i32_0 = arith.constant 0 : i32
    %c0_i32_1 = arith.constant 0 : i32
    return %arg0, %c0_i32, %c0_i32_0 : i32, i32, i32
  }
  func.func @transform_4(%arg0: i32) -> (i32, i32, i32) {
    %c0_i32 = arith.constant 0 : i32
    %c0_i32_0 = arith.constant 0 : i32
    %c0_i32_1 = arith.constant 0 : i32
    return %arg0, %c0_i32, %c0_i32_0 : i32, i32, i32
  }
  func.func @transform_5(%arg0: i32) -> (i32, i32, i32) {
    %c0_i32 = arith.constant 0 : i32
    %c0_i32_0 = arith.constant 0 : i32
    %c0_i32_1 = arith.constant 0 : i32
    return %arg0, %c0_i32, %c0_i32_0 : i32, i32, i32
  }
  func.func @transform_6(%arg0: i32) -> (i32, i32, i32) {
    %c0_i32 = arith.constant 0 : i32
    %c0_i32_0 = arith.constant 0 : i32
    %c0_i32_1 = arith.constant 0 : i32
    return %arg0, %c0_i32, %c0_i32_0 : i32, i32, i32
  }
  func.func @transform_7(%arg0: i32) -> (i32, i32, i32) {
    %c0_i32 = arith.constant 0 : i32
    %c0_i32_0 = arith.constant 0 : i32
    %c0_i32_1 = arith.constant 0 : i32
    return %arg0, %c0_i32, %c0_i32_0 : i32, i32, i32
  }
  func.func @transform_8(%arg0: i32) -> (i32, i32) {
    %c0_i32 = arith.constant 0 : i32
    %c0_i32_0 = arith.constant 0 : i32
    %c0_i32_1 = arith.constant 0 : i32
    return %c0_i32, %c0_i32_0 : i32, i32
  }
}

</mosaic_0001>

<llo_original>
// kernel: text_transformer_forward.1
$region0: #{text_transformer_forward.1}
  #allocation0 [shape = 'u32[]', space=smem, size = 0x4, offset = 0x4, fixed_abs, tag = 'smem constant byte address 0x4 - core index']
  #allocation1 [shape = 'u32[144,128]{1,0:T(1,128)}', space=vmem, size = 0x12000, scoped, tag = 'internal scratch']
  %s0 = inlined_call_operand.vmem [shape: f32[16,64], index: 0, kind: input, shape index: {}]
  %s1 = inlined_call_operand.vmem [shape: f32[2,6,64], index: 1, kind: input, shape index: {}]
  %s2 = inlined_call_operand.vmem [shape: bf16[2,64,192], index: 2, kind: input, shape index: {}]
  %s3 = inlined_call_operand.vmem [shape: f32[2,1,192], index: 3, kind: input, shape index: {}]
  %s4 = inlined_call_operand.vmem [shape: bf16[2,64,64], index: 4, kind: input, shape index: {}]
  %s5 = inlined_call_operand.vmem [shape: bf16[2,64,128], index: 5, kind: input, shape index: {}]
  %s6 = inlined_call_operand.vmem [shape: f32[2,1,128], index: 6, kind: input, shape index: {}]
  %s7 = inlined_call_operand.vmem [shape: bf16[2,128,64], index: 7, kind: input, shape index: {}]
  %s8 = inlined_call_operand.vmem [shape: f32[16,64], index: 8, kind: output, shape index: {}]
  %s9 = sld [smem:[#allocation0]]
  $region69: #{text_transformer_forward.1} parent=0
    _
  %s11 = ssub.s32 1, %s9
  %s12 = scalar_select 0, %s11, %s9
  loop: start=0, step=1, limit=4
  $region2: #{text_transformer_forward.1} parent=0 // loop_pre_header
    _
  $region3: #{text_transformer_forward.1} parent=0 // loop_header
    %s14 = sphi 0, %s18
    %p15 = scmp.ge.s32.totalorder %s14, 4
    %s22 = sphi 0, %s22
    %s24 = sphi 0, %s22
    %s25 = sphi 0, %s24
    %s39 = sphi 0, %s25
    %s45 = sphi 0, %s47
    %s48 = sphi 0, %s45
    %s49 = sphi 0, %s48
    %s65 = sphi 0, %s49
    %s71 = sphi 0, %s73
    %s74 = sphi 0, %s71
    %s75 = sphi 0, %s74
    %s91 = sphi 0, %s75
    %s97 = sphi 0, %s99
    %s100 = sphi 0, %s97
    %s101 = sphi 0, %s100
    %s117 = sphi 0, %s101
    %s123 = sphi 0, %s125
    %s126 = sphi 0, %s123
    %s127 = sphi 0, %s126
    %s143 = sphi 0, %s127
    %s149 = sphi 0, %s151
    %s152 = sphi 0, %s149
    %s153 = sphi 0, %s152
    %s169 = sphi 0, %s153
    %s175 = sphi 0, %s177
    %s178 = sphi 0, %s175
    %s179 = sphi 0, %s178
    %s195 = sphi 0, %s179
    %s201 = sphi 0, %s203
    %s204 = sphi 0, %s201
    %s205 = sphi 0, %s204
    %s221 = sphi 0, %s205
    %s225 = sphi 0, %s225
    %s227 = sphi 0, %s225
    %s228 = sphi 0, %s227
    %s242 = sphi 0, %s228
  $region4: #{text_transformer_forward.1} parent=0 // loop_header_branch
    %17 = sbr.rel (%p15) target = $region8
  $region5: #{text_transformer_forward.1} parent=0 // loop_body
    %s19 = ssub.s32 %s14, 1
    %s20 = ssub.s32 %s14, 2
    %s21 = sadd.s32 %s14, 1
    %s23 = sadd.s32 %s22, 1
    %p26 = scmp.eq.s32.totalorder %s14, 1
    %p27 = scmp.ne.s32.totalorder %s22, %s24
    %p28 = scmp.eq.s32.totalorder %s14, 0
    %p29 = por %p27, %p28
    %p30 = scmp.ne.s32.totalorder %s22, %s24
    %p31 = scmp.eq.s32.totalorder %s19, 1
    %p32 = por %p30, %p31
    %p33 = scmp.ne.s32.totalorder %s24, %s25
    %p34 = scmp.eq.s32.totalorder %s19, 0
    %p35 = por %p33, %p34
    %p36 = scmp.ne.s32.totalorder %s24, %s25
    %p37 = scmp.eq.s32.totalorder %s20, 1
    %p38 = por %p36, %p37
    %p40 = scmp.ne.s32.totalorder %s25, %s39
    %p41 = scmp.eq.s32.totalorder %s20, 0
    %p42 = por %p40, %p41
    %s43 = ssub.s32 %s14, %s21
    %p44 = scmp.eq.s32.totalorder %s43, 0
    %s46 = sadd.s32 %s45, 1
    %s47 = scalar_select %p44, %s45, %s46
    %p50 = pneg %p44
    %p51 = scmp.eq.s32.totalorder %s14, 1
    %p52 = por %p50, %p51
    %p53 = scmp.ne.s32.totalorder %s45, %s48
    %p54 = scmp.eq.s32.totalorder %s14, 0
    %p55 = por %p53, %p54
    %p56 = scmp.ne.s32.totalorder %s45, %s48
    %p57 = scmp.eq.s32.totalorder %s19, 1
    %p58 = por %p56, %p57
    %p59 = scmp.ne.s32.totalorder %s48, %s49
    %p60 = scmp.eq.s32.totalorder %s19, 0
    %p61 = por %p59, %p60
    %p62 = scmp.ne.s32.totalorder %s48, %s49
    %p63 = scmp.eq.s32.totalorder %s20, 1
    %p64 = por %p62, %p63
    %p66 = scmp.ne.s32.totalorder %s49, %s65
    %p67 = scmp.eq.s32.totalorder %s20, 0
    %p68 = por %p66, %p67
    %s69 = ssub.s32 %s14, %s21
    %p70 = scmp.eq.s32.totalorder %s69, 0
    %s72 = sadd.s32 %s71, 1
    %s73 = scalar_select %p70, %s71, %s72
    %p76 = pneg %p70
    %p77 = scmp.eq.s32.totalorder %s14, 1
    %p78 = por %p76, %p77
    %p79 = scmp.ne.s32.totalorder %s71, %s74
    %p80 = scmp.eq.s32.totalorder %s14, 0
    %p81 = por %p79, %p80
    %p82 = scmp.ne.s32.totalorder %s71, %s74
    %p83 = scmp.eq.s32.totalorder %s19, 1
    %p84 = por %p82, %p83
    %p85 = scmp.ne.s32.totalorder %s74, %s75
    %p86 = scmp.eq.s32.totalorder %s19, 0
    %p87 = por %p85, %p86
    %p88 = scmp.ne.s32.totalorder %s74, %s75
    %p89 = scmp.eq.s32.totalorder %s20, 1
    %p90 = por %p88, %p89
    %p92 = scmp.ne.s32.totalorder %s75, %s91
    %p93 = scmp.eq.s32.totalorder %s20, 0
    %p94 = por %p92, %p93
    %s95 = ssub.s32 %s14, %s21
    %p96 = scmp.eq.s32.totalorder %s95, 0
    %s98 = sadd.s32 %s97, 1
    %s99 = scalar_select %p96, %s97, %s98
    %p102 = pneg %p96
    %p103 = scmp.eq.s32.totalorder %s14, 1
    %p104 = por %p102, %p103
    %p105 = scmp.ne.s32.totalorder %s97, %s100
    %p106 = scmp.eq.s32.totalorder %s14, 0
    %p107 = por %p105, %p106
    %p108 = scmp.ne.s32.totalorder %s97, %s100
    %p109 = scmp.eq.s32.totalorder %s19, 1
    %p110 = por %p108, %p109
    %p111 = scmp.ne.s32.totalorder %s100, %s101
    %p112 = scmp.eq.s32.totalorder %s19, 0
    %p113 = por %p111, %p112
    %p114 = scmp.ne.s32.totalorder %s100, %s101
    %p115 = scmp.eq.s32.totalorder %s20, 1
    %p116 = por %p114, %p115
    %p118 = scmp.ne.s32.totalorder %s101, %s117
    %p119 = scmp.eq.s32.totalorder %s20, 0
    %p120 = por %p118, %p119
    %s121 = ssub.s32 %s14, %s21
    %p122 = scmp.eq.s32.totalorder %s121, 0
    %s124 = sadd.s32 %s123, 1
    %s125 = scalar_select %p122, %s123, %s124
    %p128 = pneg %p122
    %p129 = scmp.eq.s32.totalorder %s14, 1
    %p130 = por %p128, %p129
    %p131 = scmp.ne.s32.totalorder %s123, %s126
    %p132 = scmp.eq.s32.totalorder %s14, 0
    %p133 = por %p131, %p132
    %p134 = scmp.ne.s32.totalorder %s123, %s126
    %p135 = scmp.eq.s32.totalorder %s19, 1
    %p136 = por %p134, %p135
    %p137 = scmp.ne.s32.totalorder %s126, %s127
    %p138 = scmp.eq.s32.totalorder %s19, 0
    %p139 = por %p137, %p138
    %p140 = scmp.ne.s32.totalorder %s126, %s127
    %p141 = scmp.eq.s32.totalorder %s20, 1
    %p142 = por %p140, %p141
    %p144 = scmp.ne.s32.totalorder %s127, %s143
    %p145 = scmp.eq.s32.totalorder %s20, 0
    %p146 = por %p144, %p145
    %s147 = ssub.s32 %s14, %s21
    %p148 = scmp.eq.s32.totalorder %s147, 0
    %s150 = sadd.s32 %s149, 1
    %s151 = scalar_select %p148, %s149, %s150
    %p154 = pneg %p148
    %p155 = scmp.eq.s32.totalorder %s14, 1
    %p156 = por %p154, %p155
    %p157 = scmp.ne.s32.totalorder %s149, %s152
    %p158 = scmp.eq.s32.totalorder %s14, 0
    %p159 = por %p157, %p158
    %p160 = scmp.ne.s32.totalorder %s149, %s152
    %p161 = scmp.eq.s32.totalorder %s19, 1
    %p162 = por %p160, %p161
    %p163 = scmp.ne.s32.totalorder %s152, %s153
    %p164 = scmp.eq.s32.totalorder %s19, 0
    %p165 = por %p163, %p164
    %p166 = scmp.ne.s32.totalorder %s152, %s153
    %p167 = scmp.eq.s32.totalorder %s20, 1
    %p168 = por %p166, %p167
    %p170 = scmp.ne.s32.totalorder %s153, %s169
    %p171 = scmp.eq.s32.totalorder %s20, 0
    %p172 = por %p170, %p171
    %s173 = ssub.s32 %s14, %s21
    %p174 = scmp.eq.s32.totalorder %s173, 0
    %s176 = sadd.s32 %s175, 1
    %s177 = scalar_select %p174, %s175, %s176
    %p180 = pneg %p174
    %p181 = scmp.eq.s32.totalorder %s14, 1
    %p182 = por %p180, %p181
    %p183 = scmp.ne.s32.totalorder %s175, %s178
    %p184 = scmp.eq.s32.totalorder %s14, 0
    %p185 = por %p183, %p184
    %p186 = scmp.ne.s32.totalorder %s175, %s178
    %p187 = scmp.eq.s32.totalorder %s19, 1
    %p188 = por %p186, %p187
    %p189 = scmp.ne.s32.totalorder %s178, %s179
    %p190 = scmp.eq.s32.totalorder %s19, 0
    %p191 = por %p189, %p190
    %p192 = scmp.ne.s32.totalorder %s178, %s179
    %p193 = scmp.eq.s32.totalorder %s20, 1
    %p194 = por %p192, %p193
    %p196 = scmp.ne.s32.totalorder %s179, %s195
    %p197 = scmp.eq.s32.totalorder %s20, 0
    %p198 = por %p196, %p197
    %s199 = ssub.s32 %s14, %s21
    %p200 = scmp.eq.s32.totalorder %s199, 0
    %s202 = sadd.s32 %s201, 1
    %s203 = scalar_select %p200, %s201, %s202
    %p206 = pneg %p200
    %p207 = scmp.eq.s32.totalorder %s14, 1
    %p208 = por %p206, %p207
    %p209 = scmp.ne.s32.totalorder %s201, %s204
    %p210 = scmp.eq.s32.totalorder %s14, 0
    %p211 = por %p209, %p210
    %p212 = scmp.ne.s32.totalorder %s201, %s204
    %p213 = scmp.eq.s32.totalorder %s19, 1
    %p214 = por %p212, %p213
    %p215 = scmp.ne.s32.totalorder %s204, %s205
    %p216 = scmp.eq.s32.totalorder %s19, 0
    %p217 = por %p215, %p216
    %p218 = scmp.ne.s32.totalorder %s204, %s205
    %p219 = scmp.eq.s32.totalorder %s20, 1
    %p220 = por %p218, %p219
    %p222 = scmp.ne.s32.totalorder %s205, %s221
    %p223 = scmp.eq.s32.totalorder %s20, 0
    %p224 = por %p222, %p223
    %s226 = sadd.s32 %s225, 1
    %p229 = scmp.eq.s32.totalorder %s14, 1
    %p230 = scmp.ne.s32.totalorder %s225, %s227
    %p231 = scmp.eq.s32.totalorder %s14, 0
    %p232 = por %p230, %p231
    %p233 = scmp.ne.s32.totalorder %s225, %s227
    %p234 = scmp.eq.s32.totalorder %s19, 1
    %p235 = por %p233, %p234
    %p236 = scmp.ne.s32.totalorder %s227, %s228
    %p237 = scmp.eq.s32.totalorder %s19, 0
    %p238 = por %p236, %p237
    %p239 = scmp.ne.s32.totalorder %s227, %s228
    %p240 = scmp.eq.s32.totalorder %s20, 1
    %p241 = por %p239, %p240
    %p243 = scmp.ne.s32.totalorder %s228, %s242
    %p244 = scmp.eq.s32.totalorder %s20, 0
    %p245 = por %p243, %p244
    %p246 = scmp.le.s32.totalorder 1, %s14
    %p247 = scmp.lt.s32.totalorder %s14, 3
    %p248 = pnand %p246, %p247
    %p249 = pneg %p248
    // Predicated region
    $region9: #{text_transformer_forward.1} parent=5 // pred_check
      _
    $region10: #{text_transformer_forward.1} parent=5 // pred_check_branch
      %251 = sbr.rel (%p248) target = $region12
    $region11: #{text_transformer_forward.1} parent=5 // pred_region
      %s252 = ssub.s32 %s14, 1
      // Predicated region
      $region13: #{text_transformer_forward.1} parent=11 // pred_check
        %p253 = pneg %p35
      $region14: #{text_transformer_forward.1} parent=11 // pred_check_branch
        %255 = sbr.rel (%p253) target = $region16
      $region15: #{text_transformer_forward.1} parent=11 // pred_region
        _
      $region16: #{text_transformer_forward.1} parent=11 // pred_fallthru
        _
    $region12: #{text_transformer_forward.1} parent=5 // pred_fallthru
      _
    %p256 = scmp.lt.s32.totalorder %s14, 2
    // Predicated region
    $region17: #{text_transformer_forward.1} parent=5 // pred_check
      %p257 = pneg %p256
    $region18: #{text_transformer_forward.1} parent=5 // pred_check_branch
      %259 = sbr.rel (%p257) target = $region20
    $region19: #{text_transformer_forward.1} parent=5 // pred_region
      // Predicated region
      $region21: #{text_transformer_forward.1} parent=19 // pred_check
        %p260 = pneg %p55
      $region22: #{text_transformer_forward.1} parent=19 // pred_check_branch
        %262 = sbr.rel (%p260) target = $region24
      $region23: #{text_transformer_forward.1} parent=19 // pred_region
        %p263 = scmp.lt.s32.totalorder %s14, 1
        %s264 = scalar_select %p263, %s14, 1
        %s265 = smul.addr %s264, 8
        %s266 = scalar_lea.vmem %s1, %s265
      $region24: #{text_transformer_forward.1} parent=19 // pred_fallthru
        _
      // Predicated region
      $region25: #{text_transformer_forward.1} parent=19 // pred_check
        %p267 = pneg %p81
      $region26: #{text_transformer_forward.1} parent=19 // pred_check_branch
        %269 = sbr.rel (%p267) target = $region28
      $region27: #{text_transformer_forward.1} parent=19 // pred_region
        %p270 = scmp.lt.s32.totalorder %s14, 1
        %s271 = scalar_select %p270, %s14, 1
        %s272 = smul.addr %s271, 16
        %s273 = smul.addr %s272, 4
        %s274 = scalar_lea.vmem %s2, %s273
      $region28: #{text_transformer_forward.1} parent=19 // pred_fallthru
        _
      // Predicated region
      $region29: #{text_transformer_forward.1} parent=19 // pred_check
        %p275 = pneg %p107
      $region30: #{text_transformer_forward.1} parent=19 // pred_check_branch
        %277 = sbr.rel (%p275) target = $region32
      $region31: #{text_transformer_forward.1} parent=19 // pred_region
        %p278 = scmp.lt.s32.totalorder %s14, 1
        %s279 = scalar_select %p278, %s14, 1
        %s280 = smul.addr %s279, 2
        %s281 = scalar_lea.vmem %s3, %s280
      $region32: #{text_transformer_forward.1} parent=19 // pred_fallthru
        _
      // Predicated region
      $region33: #{text_transformer_forward.1} parent=19 // pred_check
        %p282 = pneg %p133
      $region34: #{text_transformer_forward.1} parent=19 // pred_check_branch
        %284 = sbr.rel (%p282) target = $region36
      $region35: #{text_transformer_forward.1} parent=19 // pred_region
        %p285 = scmp.lt.s32.totalorder %s14, 1
        %s286 = scalar_select %p285, %s14, 1
        %s287 = smul.addr %s286, 8
        %s288 = smul.addr %s287, 4
        %s289 = scalar_lea.vmem %s4, %s288
      $region36: #{text_transformer_forward.1} parent=19 // pred_fallthru
        _
      // Predicated region
      $region37: #{text_transformer_forward.1} parent=19 // pred_check
        %p290 = pneg %p159
      $region38: #{text_transformer_forward.1} parent=19 // pred_check_branch
        %292 = sbr.rel (%p290) target = $region40
      $region39: #{text_transformer_forward.1} parent=19 // pred_region
        %p293 = scmp.lt.s32.totalorder %s14, 1
        %s294 = scalar_select %p293, %s14, 1
        %s295 = smul.addr %s294, 8
        %s296 = smul.addr %s295, 4
        %s297 = scalar_lea.vmem %s5, %s296
      $region40: #{text_transformer_forward.1} parent=19 // pred_fallthru
        _
      // Predicated region
      $region41: #{text_transformer_forward.1} parent=19 // pred_check
        %p298 = pneg %p185
      $region42: #{text_transformer_forward.1} parent=19 // pred_check_branch
        %300 = sbr.rel (%p298) target = $region44
      $region43: #{text_transformer_forward.1} parent=19 // pred_region
        %p301 = scmp.lt.s32.totalorder %s14, 1
        %s302 = scalar_select %p301, %s14, 1
        %s303 = scalar_lea.vmem %s6, %s302
      $region44: #{text_transformer_forward.1} parent=19 // pred_fallthru
        _
      // Predicated region
      $region45: #{text_transformer_forward.1} parent=19 // pred_check
        %p304 = pneg %p211
      $region46: #{text_transformer_forward.1} parent=19 // pred_check_branch
        %306 = sbr.rel (%p304) target = $region48
      $region47: #{text_transformer_forward.1} parent=19 // pred_region
        %p307 = scmp.lt.s32.totalorder %s14, 1
        %s308 = scalar_select %p307, %s14, 1
        %s309 = smul.addr %s308, 16
        %s310 = smul.addr %s309, 4
        %s311 = scalar_lea.vmem %s7, %s310
      $region48: #{text_transformer_forward.1} parent=19 // pred_fallthru
        _
    $region20: #{text_transformer_forward.1} parent=5 // pred_fallthru
      _
    %p312 = scmp.le.s32.totalorder 1, %s14
    %p313 = scmp.lt.s32.totalorder %s14, 3
    %p314 = pnand %p312, %p313
    %p315 = pneg %p314
    // Predicated region
    $region49: #{text_transformer_forward.1} parent=5 // pred_check
      _
    $region50: #{text_transformer_forward.1} parent=5 // pred_check_branch
      %317 = sbr.rel (%p314) target = $region52
    $region51: #{text_transformer_forward.1} parent=5 // pred_region
      %s318 = ssub.s32 %s14, 1
      %p319 = pneg %p35
      %p320 = pneg %p32
      %p321 = scmp.lt.s32.totalorder %s19, 1
      %s322 = scalar_select %p321, %s19, 1
      %s323 = smul.addr %s322, 8
      %s324 = scalar_lea.vmem %s1, %s323
      %p325 = pneg %p61
      %p326 = pneg %p58
      %p327 = scmp.lt.s32.totalorder %s19, 1
      %s328 = scalar_select %p327, %s19, 1
      %s329 = smul.addr %s328, 16
      %s330 = smul.addr %s329, 4
      %s331 = scalar_lea.vmem %s2, %s330
      %p332 = pneg %p87
      %p333 = pneg %p84
      %p334 = scmp.lt.s32.totalorder %s19, 1
      %s335 = scalar_select %p334, %s19, 1
      %s336 = smul.addr %s335, 2
      %s337 = scalar_lea.vmem %s3, %s336
      %p338 = pneg %p113
      %p339 = pneg %p110
      %p340 = scmp.lt.s32.totalorder %s19, 1
      %s341 = scalar_select %p340, %s19, 1
      %s342 = smul.addr %s341, 8
      %s343 = smul.addr %s342, 4
      %s344 = scalar_lea.vmem %s4, %s343
      %p345 = pneg %p139
      %p346 = pneg %p136
      %p347 = scmp.lt.s32.totalorder %s19, 1
      %s348 = scalar_select %p347, %s19, 1
      %s349 = smul.addr %s348, 8
      %s350 = smul.addr %s349, 4
      %s351 = scalar_lea.vmem %s5, %s350
      %p352 = pneg %p165
      %p353 = pneg %p162
      %p354 = scmp.lt.s32.totalorder %s19, 1
      %s355 = scalar_select %p354, %s19, 1
      %s356 = scalar_lea.vmem %s6, %s355
      %p357 = pneg %p191
      %p358 = pneg %p188
      %p359 = scmp.lt.s32.totalorder %s19, 1
      %s360 = scalar_select %p359, %s19, 1
      %s361 = smul.addr %s360, 16
      %s362 = smul.addr %s361, 4
      %s363 = scalar_lea.vmem %s7, %s362
      %p364 = pneg %p217
      %p365 = pneg %p214
      %p366 = pneg %p238
      %p367 = pneg %p235
      %p368 = scmp.lt.s32.totalorder %s19, 1
      %s369 = scalar_select %p368, %s19, 1
      %s370 = smul.addr %s369, 8
      %s371 = scalar_lea.vmem %s1, %s370
      %p372 = scmp.lt.s32.totalorder %s19, 1
      %s373 = scalar_select %p372, %s19, 1
      %s374 = smul.addr %s373, 16
      %s375 = smul.addr %s374, 4
      %s376 = scalar_lea.vmem %s2, %s375
      %p377 = scmp.lt.s32.totalorder %s19, 1
      %s378 = scalar_select %p377, %s19, 1
      %s379 = smul.addr %s378, 2
      %s380 = scalar_lea.vmem %s3, %s379
      %p381 = scmp.lt.s32.totalorder %s19, 1
      %s382 = scalar_select %p381, %s19, 1
      %s383 = smul.addr %s382, 8
      %s384 = smul.addr %s383, 4
      %s385 = scalar_lea.vmem %s4, %s384
      %p386 = scmp.lt.s32.totalorder %s19, 1
      %s387 = scalar_select %p386, %s19, 1
      %s388 = smul.addr %s387, 8
      %s389 = smul.addr %s388, 4
      %s390 = scalar_lea.vmem %s5, %s389
      %p391 = scmp.lt.s32.totalorder %s19, 1
      %s392 = scalar_select %p391, %s19, 1
      %s393 = scalar_lea.vmem %s6, %s392
      %p394 = scmp.lt.s32.totalorder %s19, 1
      %s395 = scalar_select %p394, %s19, 1
      %s396 = smul.addr %s395, 16
      %s397 = smul.addr %s396, 4
      %s398 = scalar_lea.vmem %s7, %s397
      %p400 = scmp.eq.s32.totalorder %s19, 0
      // Predicated region
      $region53: #{text_transformer_forward.1} parent=51 // pred_check
        %p401 = pneg %p400
      $region54: #{text_transformer_forward.1} parent=51 // pred_check_branch
        %403 = sbr.rel (%p401) target = $region56
      $region55: #{text_transformer_forward.1} parent=51 // pred_region
        %v404 = vld [vmem:[%s0] sm:$0xff]
        %v405 = vld [vmem:[%s0 + $0x8] sm:$0xff]
        %vm406 = vcmask 523264
        %407 = vst.msk [vmem:[%s8] sm:$0xff] %vm406, %v404
        %408 = vst.msk [vmem:[%s8 + $0x8] sm:$0xff] %vm406, %v405
      $region56: #{text_transformer_forward.1} parent=51 // pred_fallthru
        _
      %v409 = vld [vmem:[%s8] sm:$0xff]
      %v410 = vld [vmem:[%s8 + $0x8] sm:$0xff]
      %v411 = vld [vmem:[%s371] sm:$0x1]
      %v412 = vld [vmem:[%s371 + $0x1] sm:$0x1]
      %v413 = vld [vmem:[%s371 + $0x2] sm:$0x1]
      %v414 = vld [vmem:[%s371 + $0x3] sm:$0x1]
      %v415 = vld [vmem:[%s371 + $0x4] sm:$0x1]
      %v416 = vld [vmem:[%s371 + $0x5] sm:$0x1]
      %vm417 = vcmask 523264
      %v418 = vsel %vm417, %v409, 0.0
      %419 = vadd.xlane.f32.xlu0 %v418
      %v420 = vpop.xlane.xlu0 %419
      %v421 = vsel %vm417, %v410, 0.0
      %422 = vadd.xlane.f32.xlu0 %v421
      %v423 = vpop.xlane.xlu0 %422
      %v424 = vrcp.pop 64.0
      %v425 = vmul.f32 %v420, %v424
      %v426 = vmul.f32 %v423, %v424
      %v427 = vsub.f32 %v409, %v425
      %v428 = vsub.f32 %v410, %v426
      %v429 = vmul.f32 %v427, %v427
      %v430 = vmul.f32 %v428, %v428
      %v431 = vsel %vm417, %v429, 0.0
      %432 = vadd.xlane.f32.xlu0 %v431
      %v433 = vpop.xlane.xlu0 %432
      %v434 = vsel %vm417, %v430, 0.0
      %435 = vadd.xlane.f32.xlu0 %v434
      %v436 = vpop.xlane.xlu0 %435
      %v437 = vmul.f32 %v433, %v424
      %v438 = vmul.f32 %v436, %v424
      %v439 = vadd.f32 %v437, 1e-05
      %v440 = vadd.f32 %v438, 1e-05
      %v441 = vrsqrt.pop %v439
      %v442 = vrsqrt.pop %v440
      %v443 = vmul.f32 %v427, %v441
      %v444 = vmul.f32 %v428, %v442
      %v445 = vlaneseq
      %v446 = vshrl.u32 %v445, 7
      %v447 = vsub.s32 0, %v446
      %v448 = vrot.slane %v411, %v447
      %v449 = vmul.f32 %v443, %v448
      %v450 = vmul.f32 %v444, %v448
      %v451 = vlaneseq
      %v452 = vshrl.u32 %v451, 7
      %v453 = vsub.s32 0, %v452
      %v454 = vrot.slane %v412, %v453
      %v455 = vadd.f32 %v449, %v454
      %v456 = vadd.f32 %v450, %v454
      %v457 = vpack.c.bf16 %v456, %v455
      %v458 = vld [vmem:[%s376] sm:$0xff]
      %v459 = vld [vmem:[%s376 + $0x8] sm:$0xff]
      %v460 = vld [vmem:[%s376 + $0x10] sm:$0xff]
      %v461 = vld [vmem:[%s376 + $0x18] sm:$0xff]
      %v462 = vld [vmem:[%s376 + $0x20] sm:$0xff]
      %v463 = vld [vmem:[%s376 + $0x28] sm:$0xff]
      %v464 = vld [vmem:[%s376 + $0x30] sm:$0xff]
      %v465 = vld [vmem:[%s376 + $0x38] sm:$0xff]
      %v466 = vld [vmem:[%s380] sm:$0x3]
      %v468 = vlaneseq
      %v469 = vshrl.u32 %v468, 7
      %v470 = vsub.s32 0, %v469
      %v471 = vrot.slane %v466, %v470
      %v472 = vlaneseq
      %v473 = vshrl.u32 %v472, 7
      %v474 = vsub.s32 1, %v473
      %v475 = vrot.slane %v466, %v474
      %v486 = vunpack.c.l.b16 %v458
      %v487 = vunpack.c.h.b16 %v458
      %v488 = vunpack.c.l.b16 %v459
      %v489 = vunpack.c.h.b16 %v459
      %v490 = vunpack.c.l.b16 %v460
      %v491 = vunpack.c.h.b16 %v460
      %v492 = vunpack.c.l.b16 %v461
      %v493 = vunpack.c.h.b16 %v461
      %v494 = vunpack.c.l.b16 %v462
      %v495 = vunpack.c.h.b16 %v462
      %v496 = vunpack.c.l.b16 %v463
      %v497 = vunpack.c.h.b16 %v463
      %v498 = vunpack.c.l.b16 %v464
      %v499 = vunpack.c.h.b16 %v464
      %v500 = vunpack.c.l.b16 %v465
      %v501 = vunpack.c.h.b16 %v465
      %v502 = vpack.c.b16 %v488, %v486
      %v503 = vpack.c.b16 %v489, %v487
      %v504 = vpack.c.b16 %v492, %v490
      %v505 = vpack.c.b16 %v493, %v491
      %v506 = vpack.c.b16 %v496, %v494
      %v507 = vpack.c.b16 %v497, %v495
      %v508 = vpack.c.b16 %v500, %v498
      %v509 = vpack.c.b16 %v501, %v499
      %v519 = vsel %vm417, %v457, 0
      %521 = vmatprep.subr.bf16.mxu0 %v503
      %522 = vmatpush1.bf16.msra.mxu0 %v502
      %523 = vmatprep.subr.bf16.mxu0 %v505
      %524 = vmatpush1.bf16.msra.mxu0 %v504
      %525 = vmatprep.subr.bf16.mxu0 %v507
      %526 = vmatpush1.bf16.msra.mxu0 %v506
      %527 = vmatprep.subr.bf16.mxu0 %v509
      %528 = vmatpush1.bf16.msra.mxu0 %v508
      %529 = vmatprep.subr.bf16.mxu0 0
      %530 = vmatpush1.bf16.msra.mxu0 0
      %531 = vmatprep.subr.bf16.mxu0 0
      %532 = vmatpush1.bf16.msra.mxu0 0
      %533 = vmatprep.subr.bf16.mxu0 0
      %534 = vmatpush1.bf16.msra.mxu0 0
      %535 = vmatprep.subr.bf16.mxu0 0
      %536 = vmatpush1.bf16.msra.mxu0 0
      %537 = vmatprep.subr.bf16.mxu0 0
      %538 = vmatpush1.bf16.msra.mxu0 0
      %539 = vmatprep.subr.bf16.mxu0 0
      %540 = vmatpush1.bf16.msra.mxu0 0
      %541 = vmatprep.subr.bf16.mxu0 0
      %542 = vmatpush1.bf16.msra.mxu0 0
      %543 = vmatprep.subr.bf16.mxu0 0
      %544 = vmatpush1.bf16.msra.mxu0 0
      %545 = vmatprep.subr.bf16.mxu0 0
      %546 = vmatpush1.bf16.msra.mxu0 0
      %547 = vmatprep.subr.bf16.mxu0 0
      %548 = vmatpush1.bf16.msra.mxu0 0
      %549 = vmatprep.subr.bf16.mxu0 0
      %550 = vmatpush1.bf16.msra.mxu0 0
      %551 = vmatprep.subr.bf16.mxu0 0
      %552 = vmatpush1.bf16.msra.mxu0 0
      %553 = vmatprep.mubr.bf16.mxu0 0
      %554 = vmatmul.mubr.bf16.gmra.mrb[0].mxu0 %v519
      %v555 = vpop.f32.mrb[0].mxu0
      %v556 = vadd.f32 %v471, %v555
      %v557 = vpop.f32.mrb[0].mxu0
      %v558 = vadd.f32 %v475, %v557
      %v559 = vpop.f32.mrb[0].mxu0
      %v560 = vadd.f32 %v471, %v559
      %v561 = vpop.f32.mrb[0].mxu0
      %v562 = vadd.f32 %v475, %v561
      %563 = vdwg.mxu0
      %566 = vrot.lane.b32.xlu0 %v556, 112
      %v567 = vpop.permute.xlu0 %566
      %568 = vrot.lane.b32.xlu0 %v560, 112
      %v569 = vpop.permute.xlu0 %568
      %572 = vrot.lane.b32.xlu0 %v556, 96
      %v573 = vpop.permute.xlu0 %572
      %574 = vrot.lane.b32.xlu0 %v560, 96
      %v575 = vpop.permute.xlu0 %574
      %578 = vrot.lane.b32.xlu0 %v556, 80
      %v579 = vpop.permute.xlu0 %578
      %580 = vrot.lane.b32.xlu0 %v560, 80
      %v581 = vpop.permute.xlu0 %580
      %v584 = vpack.c.bf16 %v556, %v556
      %v585 = vpack.c.bf16 %v560, %v560
      %v586 = vpack.c.bf16 %v567, %v567
      %v587 = vpack.c.bf16 %v569, %v569
      %v588 = vpack.c.bf16 %v573, %v573
      %v589 = vpack.c.bf16 %v575, %v575
      %v590 = vpack.c.bf16 %v579, %v579
      %v591 = vpack.c.bf16 %v581, %v581
      %594 = vrot.lane.b32.xlu0 %v558, 112
      %v595 = vpop.permute.xlu0 %594
      %596 = vrot.lane.b32.xlu0 %v562, 112
      %v597 = vpop.permute.xlu0 %596
      %600 = vrot.lane.b32.xlu0 %v558, 96
      %v601 = vpop.permute.xlu0 %600
      %602 = vrot.lane.b32.xlu0 %v562, 96
      %v603 = vpop.permute.xlu0 %602
      %606 = vrot.lane.b32.xlu0 %v558, 80
      %v607 = vpop.permute.xlu0 %606
      %608 = vrot.lane.b32.xlu0 %v562, 80
      %v609 = vpop.permute.xlu0 %608
      %v612 = vpack.c.bf16 %v558, %v558
      %v613 = vpack.c.bf16 %v562, %v562
      %v614 = vpack.c.bf16 %v595, %v595
      %v615 = vpack.c.bf16 %v597, %v597
      %v616 = vpack.c.bf16 %v601, %v601
      %v617 = vpack.c.bf16 %v603, %v603
      %v618 = vpack.c.bf16 %v607, %v607
      %v619 = vpack.c.bf16 %v609, %v609
      %621 = vrot.lane.b32.xlu0 %v584, 64
      %v622 = vpop.permute.xlu0 %621
      %vm623 = vcmask 130048
      %v625 = vsel %vm623, %v584, 0
      %v628 = vsel %vm623, %v622, 0
      %630 = vmatprep.subr.bf16.mxu0 0
      %631 = vmatpush1.bf16.xpose.msra.mxu0 %v628
      %632 = vmatprep.subr.bf16.mxu0 0
      %633 = vmatpush1.bf16.xpose.msra.mxu0 0
      %634 = vmatprep.subr.bf16.mxu0 0
      %635 = vmatpush1.bf16.xpose.msra.mxu0 0
      %636 = vmatprep.subr.bf16.mxu0 0
      %637 = vmatpush1.bf16.xpose.msra.mxu0 0
      %638 = vmatprep.subr.bf16.mxu0 0
      %639 = vmatpush1.bf16.xpose.msra.mxu0 0
      %640 = vmatprep.subr.bf16.mxu0 0
      %641 = vmatpush1.bf16.xpose.msra.mxu0 0
      %642 = vmatprep.subr.bf16.mxu0 0
      %643 = vmatpush1.bf16.xpose.msra.mxu0 0
      %644 = vmatprep.subr.bf16.mxu0 0
      %645 = vmatpush1.bf16.xpose.msra.mxu0 0
      %646 = vmatprep.subr.bf16.mxu0 0
      %647 = vmatpush1.bf16.xpose.msra.mxu0 0
      %648 = vmatprep.subr.bf16.mxu0 0
      %649 = vmatpush1.bf16.xpose.msra.mxu0 0
      %650 = vmatprep.subr.bf16.mxu0 0
      %651 = vmatpush1.bf16.xpose.msra.mxu0 0
      %652 = vmatprep.subr.bf16.mxu0 0
      %653 = vmatpush1.bf16.xpose.msra.mxu0 0
      %654 = vmatprep.subr.bf16.mxu0 0
      %655 = vmatpush1.bf16.xpose.msra.mxu0 0
      %656 = vmatprep.subr.bf16.mxu0 0
      %657 = vmatpush1.bf16.xpose.msra.mxu0 0
      %658 = vmatprep.subr.bf16.mxu0 0
      %659 = vmatpush1.bf16.xpose.msra.mxu0 0
      %660 = vmatprep.subr.bf16.mxu0 0
      %661 = vmatpush1.bf16.xpose.msra.mxu0 0
      %662 = vmatprep.mubr.bf16.mxu0 0
      %663 = vmatmul.mubr.bf16.gmra.mrb[0].mxu0 %v625
      %v664 = vpop.f32.mrb[0].mxu0
      %v665 = vadd.f32 0.0, %v664
      %v666 = vpop.f32.mrb[0].mxu0
      %v667 = vpop.f32.mrb[0].mxu0
      %v668 = vpop.f32.mrb[0].mxu0
      %669 = vdwg.mxu0
      %671 = vrot.lane.b32.xlu0 %v585, 64
      %v672 = vpop.permute.xlu0 %671
      %v674 = vsel %vm623, %v585, 0
      %v677 = vsel %vm623, %v672, 0
      %679 = vmatprep.subr.bf16.mxu0 0
      %680 = vmatpush1.bf16.xpose.msra.mxu0 %v677
      %681 = vmatprep.subr.bf16.mxu0 0
      %682 = vmatpush1.bf16.xpose.msra.mxu0 0
      %683 = vmatprep.subr.bf16.mxu0 0
      %684 = vmatpush1.bf16.xpose.msra.mxu0 0
      %685 = vmatprep.subr.bf16.mxu0 0
      %686 = vmatpush1.bf16.xpose.msra.mxu0 0
      %687 = vmatprep.subr.bf16.mxu0 0
      %688 = vmatpush1.bf16.xpose.msra.mxu0 0
      %689 = vmatprep.subr.bf16.mxu0 0
      %690 = vmatpush1.bf16.xpose.msra.mxu0 0
      %691 = vmatprep.subr.bf16.mxu0 0
      %692 = vmatpush1.bf16.xpose.msra.mxu0 0
      %693 = vmatprep.subr.bf16.mxu0 0
      %694 = vmatpush1.bf16.xpose.msra.mxu0 0
      %695 = vmatprep.subr.bf16.mxu0 0
      %696 = vmatpush1.bf16.xpose.msra.mxu0 0
      %697 = vmatprep.subr.bf16.mxu0 0
      %698 = vmatpush1.bf16.xpose.msra.mxu0 0
      %699 = vmatprep.subr.bf16.mxu0 0
      %700 = vmatpush1.bf16.xpose.msra.mxu0 0
      %701 = vmatprep.subr.bf16.mxu0 0
      %702 = vmatpush1.bf16.xpose.msra.mxu0 0
      %703 = vmatprep.subr.bf16.mxu0 0
      %704 = vmatpush1.bf16.xpose.msra.mxu0 0
      %705 = vmatprep.subr.bf16.mxu0 0
      %706 = vmatpush1.bf16.xpose.msra.mxu0 0
      %707 = vmatprep.subr.bf16.mxu0 0
      %708 = vmatpush1.bf16.xpose.msra.mxu0 0
      %709 = vmatprep.subr.bf16.mxu0 0
      %710 = vmatpush1.bf16.xpose.msra.mxu0 0
      %711 = vmatprep.mubr.bf16.mxu0 0
      %712 = vmatmul.mubr.bf16.gmra.mrb[0].mxu0 %v674
      %v713 = vpop.f32.mrb[0].mxu0
      %v714 = vadd.f32 0.0, %v713
      %v715 = vpop.f32.mrb[0].mxu0
      %v716 = vpop.f32.mrb[0].mxu0
      %v717 = vpop.f32.mrb[0].mxu0
      %718 = vdwg.mxu0
      %720 = vrot.lane.b32.xlu0 %v586, 64
      %v721 = vpop.permute.xlu0 %720
      %v723 = vsel %vm623, %v586, 0
      %v726 = vsel %vm623, %v721, 0
      %728 = vmatprep.subr.bf16.mxu0 0
      %729 = vmatpush1.bf16.xpose.msra.mxu0 %v726
      %730 = vmatprep.subr.bf16.mxu0 0
      %731 = vmatpush1.bf16.xpose.msra.mxu0 0
      %732 = vmatprep.subr.bf16.mxu0 0
      %733 = vmatpush1.bf16.xpose.msra.mxu0 0
      %734 = vmatprep.subr.bf16.mxu0 0
      %735 = vmatpush1.bf16.xpose.msra.mxu0 0
      %736 = vmatprep.subr.bf16.mxu0 0
      %737 = vmatpush1.bf16.xpose.msra.mxu0 0
      %738 = vmatprep.subr.bf16.mxu0 0
      %739 = vmatpush1.bf16.xpose.msra.mxu0 0
      %740 = vmatprep.subr.bf16.mxu0 0
      %741 = vmatpush1.bf16.xpose.msra.mxu0 0
      %742 = vmatprep.subr.bf16.mxu0 0
      %743 = vmatpush1.bf16.xpose.msra.mxu0 0
      %744 = vmatprep.subr.bf16.mxu0 0
      %745 = vmatpush1.bf16.xpose.msra.mxu0 0
      %746 = vmatprep.subr.bf16.mxu0 0
      %747 = vmatpush1.bf16.xpose.msra.mxu0 0
      %748 = vmatprep.subr.bf16.mxu0 0
      %749 = vmatpush1.bf16.xpose.msra.mxu0 0
      %750 = vmatprep.subr.bf16.mxu0 0
      %751 = vmatpush1.bf16.xpose.msra.mxu0 0
      %752 = vmatprep.subr.bf16.mxu0 0
      %753 = vmatpush1.bf16.xpose.msra.mxu0 0
      %754 = vmatprep.subr.bf16.mxu0 0
      %755 = vmatpush1.bf16.xpose.msra.mxu0 0
      %756 = vmatprep.subr.bf16.mxu0 0
      %757 = vmatpush1.bf16.xpose.msra.mxu0 0
      %758 = vmatprep.subr.bf16.mxu0 0
      %759 = vmatpush1.bf16.xpose.msra.mxu0 0
      %760 = vmatprep.mubr.bf16.mxu0 0
      %761 = vmatmul.mubr.bf16.gmra.mrb[0].mxu0 %v723
      %v762 = vpop.f32.mrb[0].mxu0
      %v763 = vadd.f32 0.0, %v762
      %v764 = vpop.f32.mrb[0].mxu0
      %v765 = vpop.f32.mrb[0].mxu0
      %v766 = vpop.f32.mrb[0].mxu0
      %767 = vdwg.mxu0
      %769 = vrot.lane.b32.xlu0 %v587, 64
      %v770 = vpop.permute.xlu0 %769
      %v772 = vsel %vm623, %v587, 0
      %v775 = vsel %vm623, %v770, 0
      %777 = vmatprep.subr.bf16.mxu0 0
      %778 = vmatpush1.bf16.xpose.msra.mxu0 %v775
      %779 = vmatprep.subr.bf16.mxu0 0
      %780 = vmatpush1.bf16.xpose.msra.mxu0 0
      %781 = vmatprep.subr.bf16.mxu0 0
      %782 = vmatpush1.bf16.xpose.msra.mxu0 0
      %783 = vmatprep.subr.bf16.mxu0 0
      %784 = vmatpush1.bf16.xpose.msra.mxu0 0
      %785 = vmatprep.subr.bf16.mxu0 0
      %786 = vmatpush1.bf16.xpose.msra.mxu0 0
      %787 = vmatprep.subr.bf16.mxu0 0
      %788 = vmatpush1.bf16.xpose.msra.mxu0 0
      %789 = vmatprep.subr.bf16.mxu0 0
      %790 = vmatpush1.bf16.xpose.msra.mxu0 0
      %791 = vmatprep.subr.bf16.mxu0 0
      %792 = vmatpush1.bf16.xpose.msra.mxu0 0
      %793 = vmatprep.subr.bf16.mxu0 0
      %794 = vmatpush1.bf16.xpose.msra.mxu0 0
      %795 = vmatprep.subr.bf16.mxu0 0
      %796 = vmatpush1.bf16.xpose.msra.mxu0 0
      %797 = vmatprep.subr.bf16.mxu0 0
      %798 = vmatpush1.bf16.xpose.msra.mxu0 0
      %799 = vmatprep.subr.bf16.mxu0 0
      %800 = vmatpush1.bf16.xpose.msra.mxu0 0
      %801 = vmatprep.subr.bf16.mxu0 0
      %802 = vmatpush1.bf16.xpose.msra.mxu0 0
      %803 = vmatprep.subr.bf16.mxu0 0
      %804 = vmatpush1.bf16.xpose.msra.mxu0 0
      %805 = vmatprep.subr.bf16.mxu0 0
      %806 = vmatpush1.bf16.xpose.msra.mxu0 0
      %807 = vmatprep.subr.bf16.mxu0 0
      %808 = vmatpush1.bf16.xpose.msra.mxu0 0
      %809 = vmatprep.mubr.bf16.mxu0 0
      %810 = vmatmul.mubr.bf16.gmra.mrb[0].mxu0 %v772
      %v811 = vpop.f32.mrb[0].mxu0
      %v812 = vadd.f32 0.0, %v811
      %v813 = vpop.f32.mrb[0].mxu0
      %v814 = vpop.f32.mrb[0].mxu0
      %v815 = vpop.f32.mrb[0].mxu0
      %816 = vdwg.mxu0
      %818 = vrot.lane.b32.xlu0 %v588, 64
      %v819 = vpop.permute.xlu0 %818
      %v821 = vsel %vm623, %v588, 0
      %v824 = vsel %vm623, %v819, 0
      %826 = vmatprep.subr.bf16.mxu0 0
      %827 = vmatpush1.bf16.xpose.msra.mxu0 %v824
      %828 = vmatprep.subr.bf16.mxu0 0
      %829 = vmatpush1.bf16.xpose.msra.mxu0 0
      %830 = vmatprep.subr.bf16.mxu0 0
      %831 = vmatpush1.bf16.xpose.msra.mxu0 0
      %832 = vmatprep.subr.bf16.mxu0 0
      %833 = vmatpush1.bf16.xpose.msra.mxu0 0
      %834 = vmatprep.subr.bf16.mxu0 0
      %835 = vmatpush1.bf16.xpose.msra.mxu0 0
      %836 = vmatprep.subr.bf16.mxu0 0
      %837 = vmatpush1.bf16.xpose.msra.mxu0 0
      %838 = vmatprep.subr.bf16.mxu0 0
      %839 = vmatpush1.bf16.xpose.msra.mxu0 0
      %840 = vmatprep.subr.bf16.mxu0 0
      %841 = vmatpush1.bf16.xpose.msra.mxu0 0
      %842 = vmatprep.subr.bf16.mxu0 0
      %843 = vmatpush1.bf16.xpose.msra.mxu0 0
      %844 = vmatprep.subr.bf16.mxu0 0
      %845 = vmatpush1.bf16.xpose.msra.mxu0 0
      %846 = vmatprep.subr.bf16.mxu0 0
      %847 = vmatpush1.bf16.xpose.msra.mxu0 0
      %848 = vmatprep.subr.bf16.mxu0 0
      %849 = vmatpush1.bf16.xpose.msra.mxu0 0
      %850 = vmatprep.subr.bf16.mxu0 0
      %851 = vmatpush1.bf16.xpose.msra.mxu0 0
      %852 = vmatprep.subr.bf16.mxu0 0
      %853 = vmatpush1.bf16.xpose.msra.mxu0 0
      %854 = vmatprep.subr.bf16.mxu0 0
      %855 = vmatpush1.bf16.xpose.msra.mxu0 0
      %856 = vmatprep.subr.bf16.mxu0 0
      %857 = vmatpush1.bf16.xpose.msra.mxu0 0
      %858 = vmatprep.mubr.bf16.mxu0 0
      %859 = vmatmul.mubr.bf16.gmra.mrb[0].mxu0 %v821
      %v860 = vpop.f32.mrb[0].mxu0
      %v861 = vadd.f32 0.0, %v860
      %v862 = vpop.f32.mrb[0].mxu0
      %v863 = vpop.f32.mrb[0].mxu0
      %v864 = vpop.f32.mrb[0].mxu0
      %865 = vdwg.mxu0
      %867 = vrot.lane.b32.xlu0 %v589, 64
      %v868 = vpop.permute.xlu0 %867
      %v870 = vsel %vm623, %v589, 0
      %v873 = vsel %vm623, %v868, 0
      %875 = vmatprep.subr.bf16.mxu0 0
      %876 = vmatpush1.bf16.xpose.msra.mxu0 %v873
      %877 = vmatprep.subr.bf16.mxu0 0
      %878 = vmatpush1.bf16.xpose.msra.mxu0 0
      %879 = vmatprep.subr.bf16.mxu0 0
      %880 = vmatpush1.bf16.xpose.msra.mxu0 0
      %881 = vmatprep.subr.bf16.mxu0 0
      %882 = vmatpush1.bf16.xpose.msra.mxu0 0
      %883 = vmatprep.subr.bf16.mxu0 0
      %884 = vmatpush1.bf16.xpose.msra.mxu0 0
      %885 = vmatprep.subr.bf16.mxu0 0
      %886 = vmatpush1.bf16.xpose.msra.mxu0 0
      %887 = vmatprep.subr.bf16.mxu0 0
      %888 = vmatpush1.bf16.xpose.msra.mxu0 0
      %889 = vmatprep.subr.bf16.mxu0 0
      %890 = vmatpush1.bf16.xpose.msra.mxu0 0
      %891 = vmatprep.subr.bf16.mxu0 0
      %892 = vmatpush1.bf16.xpose.msra.mxu0 0
      %893 = vmatprep.subr.bf16.mxu0 0
      %894 = vmatpush1.bf16.xpose.msra.mxu0 0
      %895 = vmatprep.subr.bf16.mxu0 0
      %896 = vmatpush1.bf16.xpose.msra.mxu0 0
      %897 = vmatprep.subr.bf16.mxu0 0
      %898 = vmatpush1.bf16.xpose.msra.mxu0 0
      %899 = vmatprep.subr.bf16.mxu0 0
      %900 = vmatpush1.bf16.xpose.msra.mxu0 0
      %901 = vmatprep.subr.bf16.mxu0 0
      %902 = vmatpush1.bf16.xpose.msra.mxu0 0
      %903 = vmatprep.subr.bf16.mxu0 0
      %904 = vmatpush1.bf16.xpose.msra.mxu0 0
      %905 = vmatprep.subr.bf16.mxu0 0
      %906 = vmatpush1.bf16.xpose.msra.mxu0 0
      %907 = vmatprep.mubr.bf16.mxu0 0
      %908 = vmatmul.mubr.bf16.gmra.mrb[0].mxu0 %v870
      %v909 = vpop.f32.mrb[0].mxu0
      %v910 = vadd.f32 0.0, %v909
      %v911 = vpop.f32.mrb[0].mxu0
      %v912 = vpop.f32.mrb[0].mxu0
      %v913 = vpop.f32.mrb[0].mxu0
      %914 = vdwg.mxu0
      %916 = vrot.lane.b32.xlu0 %v590, 64
      %v917 = vpop.permute.xlu0 %916
      %v919 = vsel %vm623, %v590, 0
      %v922 = vsel %vm623, %v917, 0
      %924 = vmatprep.subr.bf16.mxu0 0
      %925 = vmatpush1.bf16.xpose.msra.mxu0 %v922
      %926 = vmatprep.subr.bf16.mxu0 0
      %927 = vmatpush1.bf16.xpose.msra.mxu0 0
      %928 = vmatprep.subr.bf16.mxu0 0
      %929 = vmatpush1.bf16.xpose.msra.mxu0 0
      %930 = vmatprep.subr.bf16.mxu0 0
      %931 = vmatpush1.bf16.xpose.msra.mxu0 0
      %932 = vmatprep.subr.bf16.mxu0 0
      %933 = vmatpush1.bf16.xpose.msra.mxu0 0
      %934 = vmatprep.subr.bf16.mxu0 0
      %935 = vmatpush1.bf16.xpose.msra.mxu0 0
      %936 = vmatprep.subr.bf16.mxu0 0
      %937 = vmatpush1.bf16.xpose.msra.mxu0 0
      %938 = vmatprep.subr.bf16.mxu0 0
      %939 = vmatpush1.bf16.xpose.msra.mxu0 0
      %940 = vmatprep.subr.bf16.mxu0 0
      %941 = vmatpush1.bf16.xpose.msra.mxu0 0
      %942 = vmatprep.subr.bf16.mxu0 0
      %943 = vmatpush1.bf16.xpose.msra.mxu0 0
      %944 = vmatprep.subr.bf16.mxu0 0
      %945 = vmatpush1.bf16.xpose.msra.mxu0 0
      %946 = vmatprep.subr.bf16.mxu0 0
      %947 = vmatpush1.bf16.xpose.msra.mxu0 0
      %948 = vmatprep.subr.bf16.mxu0 0
      %949 = vmatpush1.bf16.xpose.msra.mxu0 0
      %950 = vmatprep.subr.bf16.mxu0 0
      %951 = vmatpush1.bf16.xpose.msra.mxu0 0
      %952 = vmatprep.subr.bf16.mxu0 0
      %953 = vmatpush1.bf16.xpose.msra.mxu0 0
      %954 = vmatprep.subr.bf16.mxu0 0
      %955 = vmatpush1.bf16.xpose.msra.mxu0 0
      %956 = vmatprep.mubr.bf16.mxu0 0
      %957 = vmatmul.mubr.bf16.gmra.mrb[0].mxu0 %v919
      %v958 = vpop.f32.mrb[0].mxu0
      %v959 = vadd.f32 0.0, %v958
      %v960 = vpop.f32.mrb[0].mxu0
      %v961 = vpop.f32.mrb[0].mxu0
      %v962 = vpop.f32.mrb[0].mxu0
      %963 = vdwg.mxu0
      %965 = vrot.lane.b32.xlu0 %v591, 64
      %v966 = vpop.permute.xlu0 %965
      %v968 = vsel %vm623, %v591, 0
      %v971 = vsel %vm623, %v966, 0
      %973 = vmatprep.subr.bf16.mxu0 0
      %974 = vmatpush1.bf16.xpose.msra.mxu0 %v971
      %975 = vmatprep.subr.bf16.mxu0 0
      %976 = vmatpush1.bf16.xpose.msra.mxu0 0
      %977 = vmatprep.subr.bf16.mxu0 0
      %978 = vmatpush1.bf16.xpose.msra.mxu0 0
      %979 = vmatprep.subr.bf16.mxu0 0
      %980 = vmatpush1.bf16.xpose.msra.mxu0 0
      %981 = vmatprep.subr.bf16.mxu0 0
      %982 = vmatpush1.bf16.xpose.msra.mxu0 0
      %983 = vmatprep.subr.bf16.mxu0 0
      %984 = vmatpush1.bf16.xpose.msra.mxu0 0
      %985 = vmatprep.subr.bf16.mxu0 0
      %986 = vmatpush1.bf16.xpose.msra.mxu0 0
      %987 = vmatprep.subr.bf16.mxu0 0
      %988 = vmatpush1.bf16.xpose.msra.mxu0 0
      %989 = vmatprep.subr.bf16.mxu0 0
      %990 = vmatpush1.bf16.xpose.msra.mxu0 0
      %991 = vmatprep.subr.bf16.mxu0 0
      %992 = vmatpush1.bf16.xpose.msra.mxu0 0
      %993 = vmatprep.subr.bf16.mxu0 0
      %994 = vmatpush1.bf16.xpose.msra.mxu0 0
      %995 = vmatprep.subr.bf16.mxu0 0
      %996 = vmatpush1.bf16.xpose.msra.mxu0 0
      %997 = vmatprep.subr.bf16.mxu0 0
      %998 = vmatpush1.bf16.xpose.msra.mxu0 0
      %999 = vmatprep.subr.bf16.mxu0 0
      %1000 = vmatpush1.bf16.xpose.msra.mxu0 0
      %1001 = vmatprep.subr.bf16.mxu0 0
      %1002 = vmatpush1.bf16.xpose.msra.mxu0 0
      %1003 = vmatprep.subr.bf16.mxu0 0
      %1004 = vmatpush1.bf16.xpose.msra.mxu0 0
      %1005 = vmatprep.mubr.bf16.mxu0 0
      %1006 = vmatmul.mubr.bf16.gmra.mrb[0].mxu0 %v968
      %v1007 = vpop.f32.mrb[0].mxu0
      %v1008 = vadd.f32 0.0, %v1007
      %v1009 = vpop.f32.mrb[0].mxu0
      %v1010 = vpop.f32.mrb[0].mxu0
      %v1011 = vpop.f32.mrb[0].mxu0
      %1012 = vdwg.mxu0
      %vm1013 = vcmask 64512
      %v1014 = vsel %vm1013, %v665, -inf
      %1015 = vmax.xlane.f32.xlu0 %v1014
      %v1016 = vpop.xlane.xlu0 %1015
      %v1017 = vsel %vm1013, %v714, -inf
      %1018 = vmax.xlane.f32.xlu0 %v1017
      %v1019 = vpop.xlane.xlu0 %1018
      %v1020 = vsel %vm1013, %v763, -inf
      %1021 = vmax.xlane.f32.xlu0 %v1020
      %v1022 = vpop.xlane.xlu0 %1021
      %v1023 = vsel %vm1013, %v812, -inf
      %1024 = vmax.xlane.f32.xlu0 %v1023
      %v1025 = vpop.xlane.xlu0 %1024
      %v1026 = vsel %vm1013, %v861, -inf
      %1027 = vmax.xlane.f32.xlu0 %v1026
      %v1028 = vpop.xlane.xlu0 %1027
      %v1029 = vsel %vm1013, %v910, -inf
      %1030 = vmax.xlane.f32.xlu0 %v1029
      %v1031 = vpop.xlane.xlu0 %1030
      %v1032 = vsel %vm1013, %v959, -inf
      %1033 = vmax.xlane.f32.xlu0 %v1032
      %v1034 = vpop.xlane.xlu0 %1033
      %v1035 = vsel %vm1013, %v1008, -inf
      %1036 = vmax.xlane.f32.xlu0 %v1035
      %v1037 = vpop.xlane.xlu0 %1036
      %v1038 = vsub.f32 %v665, %v1016
      %v1039 = vsub.f32 %v714, %v1019
      %v1040 = vsub.f32 %v763, %v1022
      %v1041 = vsub.f32 %v812, %v1025
      %v1042 = vsub.f32 %v861, %v1028
      %v1043 = vsub.f32 %v910, %v1031
      %v1044 = vsub.f32 %v959, %v1034
      %v1045 = vsub.f32 %v1008, %v1037
      %v1046 = vmul.f32 %v1038, 1.442695
      %v1047 = vpow.pop %v1046
      %v1048 = vmul.f32 %v1039, 1.442695
      %v1049 = vpow.pop %v1048
      %v1050 = vmul.f32 %v1040, 1.442695
      %v1051 = vpow.pop %v1050
      %v1052 = vmul.f32 %v1041, 1.442695
      %v1053 = vpow.pop %v1052
      %v1054 = vmul.f32 %v1042, 1.442695
      %v1055 = vpow.pop %v1054
      %v1056 = vmul.f32 %v1043, 1.442695
      %v1057 = vpow.pop %v1056
      %v1058 = vmul.f32 %v1044, 1.442695
      %v1059 = vpow.pop %v1058
      %v1060 = vmul.f32 %v1045, 1.442695
      %v1061 = vpow.pop %v1060
      %v1062 = vsel %vm1013, %v1047, 0.0
      %1063 = vadd.xlane.f32.xlu0 %v1062
      %v1064 = vpop.xlane.xlu0 %1063
      %v1065 = vsel %vm1013, %v1049, 0.0
      %1066 = vadd.xlane.f32.xlu0 %v1065
      %v1067 = vpop.xlane.xlu0 %1066
      %v1068 = vsel %vm1013, %v1051, 0.0
      %1069 = vadd.xlane.f32.xlu0 %v1068
      %v1070 = vpop.xlane.xlu0 %1069
      %v1071 = vsel %vm1013, %v1053, 0.0
      %1072 = vadd.xlane.f32.xlu0 %v1071
      %v1073 = vpop.xlane.xlu0 %1072
      %v1074 = vsel %vm1013, %v1055, 0.0
      %1075 = vadd.xlane.f32.xlu0 %v1074
      %v1076 = vpop.xlane.xlu0 %1075
      %v1077 = vsel %vm1013, %v1057, 0.0
      %1078 = vadd.xlane.f32.xlu0 %v1077
      %v1079 = vpop.xlane.xlu0 %1078
      %v1080 = vsel %vm1013, %v1059, 0.0
      %1081 = vadd.xlane.f32.xlu0 %v1080
      %v1082 = vpop.xlane.xlu0 %1081
      %v1083 = vsel %vm1013, %v1061, 0.0
      %1084 = vadd.xlane.f32.xlu0 %v1083
      %v1085 = vpop.xlane.xlu0 %1084
      %v1086 = vrcp.pop %v1064
      %v1087 = vrcp.pop %v1067
      %v1088 = vrcp.pop %v1070
      %v1089 = vrcp.pop %v1073
      %v1090 = vrcp.pop %v1076
      %v1091 = vrcp.pop %v1079
      %v1092 = vrcp.pop %v1082
      %v1093 = vrcp.pop %v1085
      %v1094 = vmul.f32 %v1047, %v1086
      %v1095 = vmul.f32 %v1049, %v1087
      %v1096 = vmul.f32 %v1051, %v1088
      %v1097 = vmul.f32 %v1053, %v1089
      %v1098 = vmul.f32 %v1055, %v1090
      %v1099 = vmul.f32 %v1057, %v1091
      %v1100 = vmul.f32 %v1059, %v1092
      %v1101 = vmul.f32 %v1061, %v1093
      %v1102 = vpack.c.bf16 %v1094, %v1094
      %v1103 = vpack.c.bf16 %v1095, %v1095
      %v1104 = vpack.c.bf16 %v1096, %v1096
      %v1105 = vpack.c.bf16 %v1097, %v1097
      %v1106 = vpack.c.bf16 %v1098, %v1098
      %v1107 = vpack.c.bf16 %v1099, %v1099
      %v1108 = vpack.c.bf16 %v1100, %v1100
      %v1109 = vpack.c.bf16 %v1101, %v1101
      %v1111 = vsel %vm1013, %v1102, 0
      %vm1113 = vcmask 1043456
      %v1115 = vsel %vm1113, %v612, 0
      %1117 = vmatprep.subr.bf16.mxu0 0
      %1118 = vmatpush1.bf16.msra.mxu0 %v1115
      %1119 = vmatprep.subr.bf16.mxu0 0
      %1120 = vmatpush1.bf16.msra.mxu0 0
      %1121 = vmatprep.subr.bf16.mxu0 0
      %1122 = vmatpush1.bf16.msra.mxu0 0
      %1123 = vmatprep.subr.bf16.mxu0 0
      %1124 = vmatpush1.bf16.msra.mxu0 0
      %1125 = vmatprep.subr.bf16.mxu0 0
      %1126 = vmatpush1.bf16.msra.mxu0 0
      %1127 = vmatprep.subr.bf16.mxu0 0
      %1128 = vmatpush1.bf16.msra.mxu0 0
      %1129 = vmatprep.subr.bf16.mxu0 0
      %1130 = vmatpush1.bf16.msra.mxu0 0
      %1131 = vmatprep.subr.bf16.mxu0 0
      %1132 = vmatpush1.bf16.msra.mxu0 0
      %1133 = vmatprep.subr.bf16.mxu0 0
      %1134 = vmatpush1.bf16.msra.mxu0 0
      %1135 = vmatprep.subr.bf16.mxu0 0
      %1136 = vmatpush1.bf16.msra.mxu0 0
      %1137 = vmatprep.subr.bf16.mxu0 0
      %1138 = vmatpush1.bf16.msra.mxu0 0
      %1139 = vmatprep.subr.bf16.mxu0 0
      %1140 = vmatpush1.bf16.msra.mxu0 0
      %1141 = vmatprep.subr.bf16.mxu0 0
      %1142 = vmatpush1.bf16.msra.mxu0 0
      %1143 = vmatprep.subr.bf16.mxu0 0
      %1144 = vmatpush1.bf16.msra.mxu0 0
      %1145 = vmatprep.subr.bf16.mxu0 0
      %1146 = vmatpush1.bf16.msra.mxu0 0
      %1147 = vmatprep.subr.bf16.mxu0 0
      %1148 = vmatpush1.bf16.msra.mxu0 0
      %1149 = vmatprep.mubr.bf16.mxu0 0
      %1150 = vmatmul.mubr.bf16.gmra.mrb[0].mxu0 %v1111
      %v1151 = vpop.f32.mrb[0].mxu0
      %v1152 = vadd.f32 0.0, %v1151
      %v1153 = vpop.f32.mrb[0].mxu0
      %v1154 = vpop.f32.mrb[0].mxu0
      %v1155 = vpop.f32.mrb[0].mxu0
      %1156 = vdwg.mxu0
      %v1158 = vsel %vm1013, %v1103, 0
      %v1161 = vsel %vm1113, %v613, 0
      %1163 = vmatprep.subr.bf16.mxu0 0
      %1164 = vmatpush1.bf16.msra.mxu0 %v1161
      %1165 = vmatprep.subr.bf16.mxu0 0
      %1166 = vmatpush1.bf16.msra.mxu0 0
      %1167 = vmatprep.subr.bf16.mxu0 0
      %1168 = vmatpush1.bf16.msra.mxu0 0
      %1169 = vmatprep.subr.bf16.mxu0 0
      %1170 = vmatpush1.bf16.msra.mxu0 0
      %1171 = vmatprep.subr.bf16.mxu0 0
      %1172 = vmatpush1.bf16.msra.mxu0 0
      %1173 = vmatprep.subr.bf16.mxu0 0
      %1174 = vmatpush1.bf16.msra.mxu0 0
      %1175 = vmatprep.subr.bf16.mxu0 0
      %1176 = vmatpush1.bf16.msra.mxu0 0
      %1177 = vmatprep.subr.bf16.mxu0 0
      %1178 = vmatpush1.bf16.msra.mxu0 0
      %1179 = vmatprep.subr.bf16.mxu0 0
      %1180 = vmatpush1.bf16.msra.mxu0 0
      %1181 = vmatprep.subr.bf16.mxu0 0
      %1182 = vmatpush1.bf16.msra.mxu0 0
      %1183 = vmatprep.subr.bf16.mxu0 0
      %1184 = vmatpush1.bf16.msra.mxu0 0
      %1185 = vmatprep.subr.bf16.mxu0 0
      %1186 = vmatpush1.bf16.msra.mxu0 0
      %1187 = vmatprep.subr.bf16.mxu0 0
      %1188 = vmatpush1.bf16.msra.mxu0 0
      %1189 = vmatprep.subr.bf16.mxu0 0
      %1190 = vmatpush1.bf16.msra.mxu0 0
      %1191 = vmatprep.subr.bf16.mxu0 0
      %1192 = vmatpush1.bf16.msra.mxu0 0
      %1193 = vmatprep.subr.bf16.mxu0 0
      %1194 = vmatpush1.bf16.msra.mxu0 0
      %1195 = vmatprep.mubr.bf16.mxu0 0
      %1196 = vmatmul.mubr.bf16.gmra.mrb[0].mxu0 %v1158
      %v1197 = vpop.f32.mrb[0].mxu0
      %v1198 = vadd.f32 0.0, %v1197
      %v1199 = vpop.f32.mrb[0].mxu0
      %v1200 = vpop.f32.mrb[0].mxu0
      %v1201 = vpop.f32.mrb[0].mxu0
      %1202 = vdwg.mxu0
      %v1204 = vsel %vm1013, %v1104, 0
      %v1207 = vsel %vm1113, %v614, 0
      %1209 = vmatprep.subr.bf16.mxu0 0
      %1210 = vmatpush1.bf16.msra.mxu0 %v1207
      %1211 = vmatprep.subr.bf16.mxu0 0
      %1212 = vmatpush1.bf16.msra.mxu0 0
      %1213 = vmatprep.subr.bf16.mxu0 0
      %1214 = vmatpush1.bf16.msra.mxu0 0
      %1215 = vmatprep.subr.bf16.mxu0 0
      %1216 = vmatpush1.bf16.msra.mxu0 0
      %1217 = vmatprep.subr.bf16.mxu0 0
      %1218 = vmatpush1.bf16.msra.mxu0 0
      %1219 = vmatprep.subr.bf16.mxu0 0
      %1220 = vmatpush1.bf16.msra.mxu0 0
      %1221 = vmatprep.subr.bf16.mxu0 0
      %1222 = vmatpush1.bf16.msra.mxu0 0
      %1223 = vmatprep.subr.bf16.mxu0 0
      %1224 = vmatpush1.bf16.msra.mxu0 0
      %1225 = vmatprep.subr.bf16.mxu0 0
      %1226 = vmatpush1.bf16.msra.mxu0 0
      %1227 = vmatprep.subr.bf16.mxu0 0
      %1228 = vmatpush1.bf16.msra.mxu0 0
      %1229 = vmatprep.subr.bf16.mxu0 0
      %1230 = vmatpush1.bf16.msra.mxu0 0
      %1231 = vmatprep.subr.bf16.mxu0 0
      %1232 = vmatpush1.bf16.msra.mxu0 0
      %1233 = vmatprep.subr.bf16.mxu0 0
      %1234 = vmatpush1.bf16.msra.mxu0 0
      %1235 = vmatprep.subr.bf16.mxu0 0
      %1236 = vmatpush1.bf16.msra.mxu0 0
      %1237 = vmatprep.subr.bf16.mxu0 0
      %1238 = vmatpush1.bf16.msra.mxu0 0
      %1239 = vmatprep.subr.bf16.mxu0 0
      %1240 = vmatpush1.bf16.msra.mxu0 0
      %1241 = vmatprep.mubr.bf16.mxu0 0
      %1242 = vmatmul.mubr.bf16.gmra.mrb[0].mxu0 %v1204
      %v1243 = vpop.f32.mrb[0].mxu0
      %v1244 = vadd.f32 0.0, %v1243
      %v1245 = vpop.f32.mrb[0].mxu0
      %v1246 = vpop.f32.mrb[0].mxu0
      %v1247 = vpop.f32.mrb[0].mxu0
      %1248 = vdwg.mxu0
      %v1250 = vsel %vm1013, %v1105, 0
      %v1253 = vsel %vm1113, %v615, 0
      %1255 = vmatprep.subr.bf16.mxu0 0
      %1256 = vmatpush1.bf16.msra.mxu0 %v1253
      %1257 = vmatprep.subr.bf16.mxu0 0
      %1258 = vmatpush1.bf16.msra.mxu0 0
      %1259 = vmatprep.subr.bf16.mxu0 0
      %1260 = vmatpush1.bf16.msra.mxu0 0
      %1261 = vmatprep.subr.bf16.mxu0 0
      %1262 = vmatpush1.bf16.msra.mxu0 0
      %1263 = vmatprep.subr.bf16.mxu0 0
      %1264 = vmatpush1.bf16.msra.mxu0 0
      %1265 = vmatprep.subr.bf16.mxu0 0
      %1266 = vmatpush1.bf16.msra.mxu0 0
      %1267 = vmatprep.subr.bf16.mxu0 0
      %1268 = vmatpush1.bf16.msra.mxu0 0
      %1269 = vmatprep.subr.bf16.mxu0 0
      %1270 = vmatpush1.bf16.msra.mxu0 0
      %1271 = vmatprep.subr.bf16.mxu0 0
      %1272 = vmatpush1.bf16.msra.mxu0 0
      %1273 = vmatprep.subr.bf16.mxu0 0
      %1274 = vmatpush1.bf16.msra.mxu0 0
      %1275 = vmatprep.subr.bf16.mxu0 0
      %1276 = vmatpush1.bf16.msra.mxu0 0
      %1277 = vmatprep.subr.bf16.mxu0 0
      %1278 = vmatpush1.bf16.msra.mxu0 0
      %1279 = vmatprep.subr.bf16.mxu0 0
      %1280 = vmatpush1.bf16.msra.mxu0 0
      %1281 = vmatprep.subr.bf16.mxu0 0
      %1282 = vmatpush1.bf16.msra.mxu0 0
      %1283 = vmatprep.subr.bf16.mxu0 0
      %1284 = vmatpush1.bf16.msra.mxu0 0
      %1285 = vmatprep.subr.bf16.mxu0 0
      %1286 = vmatpush1.bf16.msra.mxu0 0
      %1287 = vmatprep.mubr.bf16.mxu0 0
      %1288 = vmatmul.mubr.bf16.gmra.mrb[0].mxu0 %v1250
      %v1289 = vpop.f32.mrb[0].mxu0
      %v1290 = vadd.f32 0.0, %v1289
      %v1291 = vpop.f32.mrb[0].mxu0
      %v1292 = vpop.f32.mrb[0].mxu0
      %v1293 = vpop.f32.mrb[0].mxu0
      %1294 = vdwg.mxu0
      %v1296 = vsel %vm1013, %v1106, 0
      %v1299 = vsel %vm1113, %v616, 0
      %1301 = vmatprep.subr.bf16.mxu0 0
      %1302 = vmatpush1.bf16.msra.mxu0 %v1299
      %1303 = vmatprep.subr.bf16.mxu0 0
      %1304 = vmatpush1.bf16.msra.mxu0 0
      %1305 = vmatprep.subr.bf16.mxu0 0
      %1306 = vmatpush1.bf16.msra.mxu0 0
      %1307 = vmatprep.subr.bf16.mxu0 0
      %1308 = vmatpush1.bf16.msra.mxu0 0
      %1309 = vmatprep.subr.bf16.mxu0 0
      %1310 = vmatpush1.bf16.msra.mxu0 0
      %1311 = vmatprep.subr.bf16.mxu0 0
      %1312 = vmatpush1.bf16.msra.mxu0 0
      %1313 = vmatprep.subr.bf16.mxu0 0
      %1314 = vmatpush1.bf16.msra.mxu0 0
      %1315 = vmatprep.subr.bf16.mxu0 0
      %1316 = vmatpush1.bf16.msra.mxu0 0
      %1317 = vmatprep.subr.bf16.mxu0 0
      %1318 = vmatpush1.bf16.msra.mxu0 0
      %1319 = vmatprep.subr.bf16.mxu0 0
      %1320 = vmatpush1.bf16.msra.mxu0 0
      %1321 = vmatprep.subr.bf16.mxu0 0
      %1322 = vmatpush1.bf16.msra.mxu0 0
      %1323 = vmatprep.subr.bf16.mxu0 0
      %1324 = vmatpush1.bf16.msra.mxu0 0
      %1325 = vmatprep.subr.bf16.mxu0 0
      %1326 = vmatpush1.bf16.msra.mxu0 0
      %1327 = vmatprep.subr.bf16.mxu0 0
      %1328 = vmatpush1.bf16.msra.mxu0 0
      %1329 = vmatprep.subr.bf16.mxu0 0
      %1330 = vmatpush1.bf16.msra.mxu0 0
      %1331 = vmatprep.subr.bf16.mxu0 0
      %1332 = vmatpush1.bf16.msra.mxu0 0
      %1333 = vmatprep.mubr.bf16.mxu0 0
      %1334 = vmatmul.mubr.bf16.gmra.mrb[0].mxu0 %v1296
      %v1335 = vpop.f32.mrb[0].mxu0
      %v1336 = vadd.f32 0.0, %v1335
      %v1337 = vpop.f32.mrb[0].mxu0
      %v1338 = vpop.f32.mrb[0].mxu0
      %v1339 = vpop.f32.mrb[0].mxu0
      %1340 = vdwg.mxu0
      %v1342 = vsel %vm1013, %v1107, 0
      %v1345 = vsel %vm1113, %v617, 0
      %1347 = vmatprep.subr.bf16.mxu0 0
      %1348 = vmatpush1.bf16.msra.mxu0 %v1345
      %1349 = vmatprep.subr.bf16.mxu0 0
      %1350 = vmatpush1.bf16.msra.mxu0 0
      %1351 = vmatprep.subr.bf16.mxu0 0
      %1352 = vmatpush1.bf16.msra.mxu0 0
      %1353 = vmatprep.subr.bf16.mxu0 0
      %1354 = vmatpush1.bf16.msra.mxu0 0
      %1355 = vmatprep.subr.bf16.mxu0 0
      %1356 = vmatpush1.bf16.msra.mxu0 0
      %1357 = vmatprep.subr.bf16.mxu0 0
      %1358 = vmatpush1.bf16.msra.mxu0 0
      %1359 = vmatprep.subr.bf16.mxu0 0
      %1360 = vmatpush1.bf16.msra.mxu0 0
      %1361 = vmatprep.subr.bf16.mxu0 0
      %1362 = vmatpush1.bf16.msra.mxu0 0
      %1363 = vmatprep.subr.bf16.mxu0 0
      %1364 = vmatpush1.bf16.msra.mxu0 0
      %1365 = vmatprep.subr.bf16.mxu0 0
      %1366 = vmatpush1.bf16.msra.mxu0 0
      %1367 = vmatprep.subr.bf16.mxu0 0
      %1368 = vmatpush1.bf16.msra.mxu0 0
      %1369 = vmatprep.subr.bf16.mxu0 0
      %1370 = vmatpush1.bf16.msra.mxu0 0
      %1371 = vmatprep.subr.bf16.mxu0 0
      %1372 = vmatpush1.bf16.msra.mxu0 0
      %1373 = vmatprep.subr.bf16.mxu0 0
      %1374 = vmatpush1.bf16.msra.mxu0 0
      %1375 = vmatprep.subr.bf16.mxu0 0
      %1376 = vmatpush1.bf16.msra.mxu0 0
      %1377 = vmatprep.subr.bf16.mxu0 0
      %1378 = vmatpush1.bf16.msra.mxu0 0
      %1379 = vmatprep.mubr.bf16.mxu0 0
      %1380 = vmatmul.mubr.bf16.gmra.mrb[0].mxu0 %v1342
      %v1381 = vpop.f32.mrb[0].mxu0
      %v1382 = vadd.f32 0.0, %v1381
      %v1383 = vpop.f32.mrb[0].mxu0
      %v1384 = vpop.f32.mrb[0].mxu0
      %v1385 = vpop.f32.mrb[0].mxu0
      %1386 = vdwg.mxu0
      %v1388 = vsel %vm1013, %v1108, 0
      %v1391 = vsel %vm1113, %v618, 0
      %1393 = vmatprep.subr.bf16.mxu0 0
      %1394 = vmatpush1.bf16.msra.mxu0 %v1391
      %1395 = vmatprep.subr.bf16.mxu0 0
      %1396 = vmatpush1.bf16.msra.mxu0 0
      %1397 = vmatprep.subr.bf16.mxu0 0
      %1398 = vmatpush1.bf16.msra.mxu0 0
      %1399 = vmatprep.subr.bf16.mxu0 0
      %1400 = vmatpush1.bf16.msra.mxu0 0
      %1401 = vmatprep.subr.bf16.mxu0 0
      %1402 = vmatpush1.bf16.msra.mxu0 0
      %1403 = vmatprep.subr.bf16.mxu0 0
      %1404 = vmatpush1.bf16.msra.mxu0 0
      %1405 = vmatprep.subr.bf16.mxu0 0
      %1406 = vmatpush1.bf16.msra.mxu0 0
      %1407 = vmatprep.subr.bf16.mxu0 0
      %1408 = vmatpush1.bf16.msra.mxu0 0
      %1409 = vmatprep.subr.bf16.mxu0 0
      %1410 = vmatpush1.bf16.msra.mxu0 0
      %1411 = vmatprep.subr.bf16.mxu0 0
      %1412 = vmatpush1.bf16.msra.mxu0 0
      %1413 = vmatprep.subr.bf16.mxu0 0
      %1414 = vmatpush1.bf16.msra.mxu0 0
      %1415 = vmatprep.subr.bf16.mxu0 0
      %1416 = vmatpush1.bf16.msra.mxu0 0
      %1417 = vmatprep.subr.bf16.mxu0 0
      %1418 = vmatpush1.bf16.msra.mxu0 0
      %1419 = vmatprep.subr.bf16.mxu0 0
      %1420 = vmatpush1.bf16.msra.mxu0 0
      %1421 = vmatprep.subr.bf16.mxu0 0
      %1422 = vmatpush1.bf16.msra.mxu0 0
      %1423 = vmatprep.subr.bf16.mxu0 0
      %1424 = vmatpush1.bf16.msra.mxu0 0
      %1425 = vmatprep.mubr.bf16.mxu0 0
      %1426 = vmatmul.mubr.bf16.gmra.mrb[0].mxu0 %v1388
      %v1427 = vpop.f32.mrb[0].mxu0
      %v1428 = vadd.f32 0.0, %v1427
      %v1429 = vpop.f32.mrb[0].mxu0
      %v1430 = vpop.f32.mrb[0].mxu0
      %v1431 = vpop.f32.mrb[0].mxu0
      %1432 = vdwg.mxu0
      %v1434 = vsel %vm1013, %v1109, 0
      %v1437 = vsel %vm1113, %v619, 0
      %1439 = vmatprep.subr.bf16.mxu0 0
      %1440 = vmatpush1.bf16.msra.mxu0 %v1437
      %1441 = vmatprep.subr.bf16.mxu0 0
      %1442 = vmatpush1.bf16.msra.mxu0 0
      %1443 = vmatprep.subr.bf16.mxu0 0
      %1444 = vmatpush1.bf16.msra.mxu0 0
      %1445 = vmatprep.subr.bf16.mxu0 0
      %1446 = vmatpush1.bf16.msra.mxu0 0
      %1447 = vmatprep.subr.bf16.mxu0 0
      %1448 = vmatpush1.bf16.msra.mxu0 0
      %1449 = vmatprep.subr.bf16.mxu0 0
      %1450 = vmatpush1.bf16.msra.mxu0 0
      %1451 = vmatprep.subr.bf16.mxu0 0
      %1452 = vmatpush1.bf16.msra.mxu0 0
      %1453 = vmatprep.subr.bf16.mxu0 0
      %1454 = vmatpush1.bf16.msra.mxu0 0
      %1455 = vmatprep.subr.bf16.mxu0 0
      %1456 = vmatpush1.bf16.msra.mxu0 0
      %1457 = vmatprep.subr.bf16.mxu0 0
      %1458 = vmatpush1.bf16.msra.mxu0 0
      %1459 = vmatprep.subr.bf16.mxu0 0
      %1460 = vmatpush1.bf16.msra.mxu0 0
      %1461 = vmatprep.subr.bf16.mxu0 0
      %1462 = vmatpush1.bf16.msra.mxu0 0
      %1463 = vmatprep.subr.bf16.mxu0 0
      %1464 = vmatpush1.bf16.msra.mxu0 0
      %1465 = vmatprep.subr.bf16.mxu0 0
      %1466 = vmatpush1.bf16.msra.mxu0 0
      %1467 = vmatprep.subr.bf16.mxu0 0
      %1468 = vmatpush1.bf16.msra.mxu0 0
      %1469 = vmatprep.subr.bf16.mxu0 0
      %1470 = vmatpush1.bf16.msra.mxu0 0
      %1471 = vmatprep.mubr.bf16.mxu0 0
      %1472 = vmatmul.mubr.bf16.gmra.mrb[0].mxu0 %v1434
      %v1473 = vpop.f32.mrb[0].mxu0
      %v1474 = vadd.f32 0.0, %v1473
      %v1475 = vpop.f32.mrb[0].mxu0
      %v1476 = vpop.f32.mrb[0].mxu0
      %v1477 = vpop.f32.mrb[0].mxu0
      %1478 = vdwg.mxu0
      %1481 = vrot.lane.b32.xlu0 %v1244, 16
      %v1482 = vpop.permute.xlu0 %1481
      %1483 = vrot.lane.b32.xlu0 %v1290, 16
      %v1484 = vpop.permute.xlu0 %1483
      %1489 = vrot.lane.b32.xlu0 %v1336, 32
      %v1490 = vpop.permute.xlu0 %1489
      %1491 = vrot.lane.b32.xlu0 %v1382, 32
      %v1492 = vpop.permute.xlu0 %1491
      %1497 = vrot.lane.b32.xlu0 %v1428, 48
      %v1498 = vpop.permute.xlu0 %1497
      %1499 = vrot.lane.b32.xlu0 %v1474, 48
      %v1500 = vpop.permute.xlu0 %1499
      %v1503 = vsel %vm623, %v1152, %v1482
      %v1504 = vsel %vm623, %v1198, %v1484
      %vm1505 = vcmask 261120
      %v1506 = vsel %vm1505, %v1503, %v1490
      %v1507 = vsel %vm1505, %v1504, %v1492
      %vm1508 = vcmask 392192
      %v1509 = vsel %vm1508, %v1506, %v1498
      %v1510 = vsel %vm1508, %v1507, %v1500
      %v1511 = vpack.c.bf16 %v1510, %v1509
      %v1512 = vld [vmem:[%s385] sm:$0xf]
      %v1513 = vld [vmem:[%s385 + $0x4] sm:$0xf]
      %v1514 = vld [vmem:[%s385 + $0x8] sm:$0xf]
      %v1515 = vld [vmem:[%s385 + $0xc] sm:$0xf]
      %v1516 = vld [vmem:[%s385 + $0x10] sm:$0xf]
      %v1517 = vld [vmem:[%s385 + $0x14] sm:$0xf]
      %v1518 = vld [vmem:[%s385 + $0x18] sm:$0xf]
      %v1519 = vld [vmem:[%s385 + $0x1c] sm:$0xf]
      %v1520 = vlaneseq
      %v1521 = vshrl.u32 %v1520, 7
      %v1522 = vsub.s32 0, %v1521
      %v1523 = vrot.slane %v413, %v1522
      %v1532 = vunpack.c.l.b16 %v1512
      %v1533 = vunpack.c.l.b16 %v1513
      %v1534 = vunpack.c.l.b16 %v1514
      %v1535 = vunpack.c.l.b16 %v1515
      %v1536 = vunpack.c.l.b16 %v1516
      %v1537 = vunpack.c.l.b16 %v1517
      %v1538 = vunpack.c.l.b16 %v1518
      %v1539 = vunpack.c.l.b16 %v1519
      %v1540 = vpack.c.b16 %v1533, %v1532
      %v1541 = vpack.c.b16 %v1535, %v1534
      %v1542 = vpack.c.b16 %v1537, %v1536
      %v1543 = vpack.c.b16 %v1539, %v1538
      %v1549 = vsel %vm417, %v1511, 0
      %1551 = vmatprep.subr.bf16.mxu0 0
      %1552 = vmatpush1.bf16.msra.mxu0 %v1540
      %1553 = vmatprep.subr.bf16.mxu0 0
      %1554 = vmatpush1.bf16.msra.mxu0 %v1541
      %1555 = vmatprep.subr.bf16.mxu0 0
      %1556 = vmatpush1.bf16.msra.mxu0 %v1542
      %1557 = vmatprep.subr.bf16.mxu0 0
      %1558 = vmatpush1.bf16.msra.mxu0 %v1543
      %1559 = vmatprep.subr.bf16.mxu0 0
      %1560 = vmatpush1.bf16.msra.mxu0 0
      %1561 = vmatprep.subr.bf16.mxu0 0
      %1562 = vmatpush1.bf16.msra.mxu0 0
      %1563 = vmatprep.subr.bf16.mxu0 0
      %1564 = vmatpush1.bf16.msra.mxu0 0
      %1565 = vmatprep.subr.bf16.mxu0 0
      %1566 = vmatpush1.bf16.msra.mxu0 0
      %1567 = vmatprep.subr.bf16.mxu0 0
      %1568 = vmatpush1.bf16.msra.mxu0 0
      %1569 = vmatprep.subr.bf16.mxu0 0
      %1570 = vmatpush1.bf16.msra.mxu0 0
      %1571 = vmatprep.subr.bf16.mxu0 0
      %1572 = vmatpush1.bf16.msra.mxu0 0
      %1573 = vmatprep.subr.bf16.mxu0 0
      %1574 = vmatpush1.bf16.msra.mxu0 0
      %1575 = vmatprep.subr.bf16.mxu0 0
      %1576 = vmatpush1.bf16.msra.mxu0 0
      %1577 = vmatprep.subr.bf16.mxu0 0
      %1578 = vmatpush1.bf16.msra.mxu0 0
      %1579 = vmatprep.subr.bf16.mxu0 0
      %1580 = vmatpush1.bf16.msra.mxu0 0
      %1581 = vmatprep.subr.bf16.mxu0 0
      %1582 = vmatpush1.bf16.msra.mxu0 0
      %1583 = vmatprep.mubr.bf16.mxu0 0
      %1584 = vmatmul.mubr.bf16.gmra.mrb[0].mxu0 %v1549
      %v1585 = vpop.f32.mrb[0].mxu0
      %v1586 = vadd.f32 %v1523, %v1585
      %v1587 = vpop.f32.mrb[0].mxu0
      %v1588 = vpop.f32.mrb[0].mxu0
      %v1589 = vadd.f32 %v1523, %v1588
      %v1590 = vpop.f32.mrb[0].mxu0
      %1591 = vdwg.mxu0
      %v1592 = vadd.f32 %v409, %v1586
      %v1593 = vadd.f32 %v410, %v1589
      %v1594 = vsel %vm417, %v1592, 0.0
      %1595 = vadd.xlane.f32.xlu0 %v1594
      %v1596 = vpop.xlane.xlu0 %1595
      %v1597 = vsel %vm417, %v1593, 0.0
      %1598 = vadd.xlane.f32.xlu0 %v1597
      %v1599 = vpop.xlane.xlu0 %1598
      %v1600 = vmul.f32 %v1596, %v424
      %v1601 = vmul.f32 %v1599, %v424
      %v1602 = vsub.f32 %v1592, %v1600
      %v1603 = vsub.f32 %v1593, %v1601
      %v1604 = vmul.f32 %v1602, %v1602
      %v1605 = vmul.f32 %v1603, %v1603
      %v1606 = vsel %vm417, %v1604, 0.0
      %1607 = vadd.xlane.f32.xlu0 %v1606
      %v1608 = vpop.xlane.xlu0 %1607
      %v1609 = vsel %vm417, %v1605, 0.0
      %1610 = vadd.xlane.f32.xlu0 %v1609
      %v1611 = vpop.xlane.xlu0 %1610
      %v1612 = vmul.f32 %v1608, %v424
      %v1613 = vmul.f32 %v1611, %v424
      %v1614 = vadd.f32 %v1612, 1e-05
      %v1615 = vadd.f32 %v1613, 1e-05
      %v1616 = vrsqrt.pop %v1614
      %v1617 = vrsqrt.pop %v1615
      %v1618 = vmul.f32 %v1602, %v1616
      %v1619 = vmul.f32 %v1603, %v1617
      %v1620 = vlaneseq
      %v1621 = vshrl.u32 %v1620, 7
      %v1622 = vsub.s32 0, %v1621
      %v1623 = vrot.slane %v414, %v1622
      %v1624 = vmul.f32 %v1618, %v1623
      %v1625 = vmul.f32 %v1619, %v1623
      %v1626 = vlaneseq
      %v1627 = vshrl.u32 %v1626, 7
      %v1628 = vsub.s32 0, %v1627
      %v1629 = vrot.slane %v415, %v1628
      %v1630 = vadd.f32 %v1624, %v1629
      %v1631 = vadd.f32 %v1625, %v1629
      %v1632 = vpack.c.bf16 %v1631, %v1630
      %v1633 = vld [vmem:[%s390] sm:$0xf]
      %v1634 = vld [vmem:[%s390 + $0x4] sm:$0xf]
      %v1635 = vld [vmem:[%s390 + $0x8] sm:$0xf]
      %v1636 = vld [vmem:[%s390 + $0xc] sm:$0xf]
      %v1637 = vld [vmem:[%s390 + $0x10] sm:$0xf]
      %v1638 = vld [vmem:[%s390 + $0x14] sm:$0xf]
      %v1639 = vld [vmem:[%s390 + $0x18] sm:$0xf]
      %v1640 = vld [vmem:[%s390 + $0x1c] sm:$0xf]
      %v1641 = vld [vmem:[%s393] sm:$0x1]
      %v1643 = vlaneseq
      %v1644 = vshrl.u32 %v1643, 7
      %v1645 = vsub.s32 0, %v1644
      %v1646 = vrot.slane %v1641, %v1645
      %v1656 = vunpack.c.l.b16 %v1633
      %v1657 = vunpack.c.l.b16 %v1634
      %v1658 = vunpack.c.l.b16 %v1635
      %v1659 = vunpack.c.l.b16 %v1636
      %v1660 = vunpack.c.l.b16 %v1637
      %v1661 = vunpack.c.l.b16 %v1638
      %v1662 = vunpack.c.l.b16 %v1639
      %v1663 = vunpack.c.l.b16 %v1640
      %v1664 = vpack.c.b16 %v1657, %v1656
      %v1665 = vpack.c.b16 %v1659, %v1658
      %v1666 = vpack.c.b16 %v1661, %v1660
      %v1667 = vpack.c.b16 %v1663, %v1662
      %v1673 = vsel %vm417, %v1632, 0
      %1675 = vmatprep.subr.bf16.mxu0 0
      %1676 = vmatpush1.bf16.msra.mxu0 %v1664
      %1677 = vmatprep.subr.bf16.mxu0 0
      %1678 = vmatpush1.bf16.msra.mxu0 %v1665
      %1679 = vmatprep.subr.bf16.mxu0 0
      %1680 = vmatpush1.bf16.msra.mxu0 %v1666
      %1681 = vmatprep.subr.bf16.mxu0 0
      %1682 = vmatpush1.bf16.msra.mxu0 %v1667
      %1683 = vmatprep.subr.bf16.mxu0 0
      %1684 = vmatpush1.bf16.msra.mxu0 0
      %1685 = vmatprep.subr.bf16.mxu0 0
      %1686 = vmatpush1.bf16.msra.mxu0 0
      %1687 = vmatprep.subr.bf16.mxu0 0
      %1688 = vmatpush1.bf16.msra.mxu0 0
      %1689 = vmatprep.subr.bf16.mxu0 0
      %1690 = vmatpush1.bf16.msra.mxu0 0
      %1691 = vmatprep.subr.bf16.mxu0 0
      %1692 = vmatpush1.bf16.msra.mxu0 0
      %1693 = vmatprep.subr.bf16.mxu0 0
      %1694 = vmatpush1.bf16.msra.mxu0 0
      %1695 = vmatprep.subr.bf16.mxu0 0
      %1696 = vmatpush1.bf16.msra.mxu0 0
      %1697 = vmatprep.subr.bf16.mxu0 0
      %1698 = vmatpush1.bf16.msra.mxu0 0
      %1699 = vmatprep.subr.bf16.mxu0 0
      %1700 = vmatpush1.bf16.msra.mxu0 0
      %1701 = vmatprep.subr.bf16.mxu0 0
      %1702 = vmatpush1.bf16.msra.mxu0 0
      %1703 = vmatprep.subr.bf16.mxu0 0
      %1704 = vmatpush1.bf16.msra.mxu0 0
      %1705 = vmatprep.subr.bf16.mxu0 0
      %1706 = vmatpush1.bf16.msra.mxu0 0
      %1707 = vmatprep.mubr.bf16.mxu0 0
      %1708 = vmatmul.mubr.bf16.gmra.mrb[0].mxu0 %v1673
      %v1709 = vpop.f32.mrb[0].mxu0
      %v1710 = vadd.f32 %v1646, %v1709
      %v1711 = vpop.f32.mrb[0].mxu0
      %v1712 = vpop.f32.mrb[0].mxu0
      %v1713 = vadd.f32 %v1646, %v1712
      %v1714 = vpop.f32.mrb[0].mxu0
      %1715 = vdwg.mxu0
      %v1716 = vmax.f32 %v1710, 0.0
      %v1717 = vmax.f32 %v1713, 0.0
      %v1718 = vpack.c.bf16 %v1717, %v1716
      %v1719 = vld [vmem:[%s398] sm:$0xf]
      %v1720 = vld [vmem:[%s398 + $0x4] sm:$0xf]
      %v1721 = vld [vmem:[%s398 + $0x8] sm:$0xf]
      %v1722 = vld [vmem:[%s398 + $0xc] sm:$0xf]
      %v1723 = vld [vmem:[%s398 + $0x10] sm:$0xf]
      %v1724 = vld [vmem:[%s398 + $0x14] sm:$0xf]
      %v1725 = vld [vmem:[%s398 + $0x18] sm:$0xf]
      %v1726 = vld [vmem:[%s398 + $0x1c] sm:$0xf]
      %v1727 = vld [vmem:[%s398 + $0x20] sm:$0xf]
      %v1728 = vld [vmem:[%s398 + $0x24] sm:$0xf]
      %v1729 = vld [vmem:[%s398 + $0x28] sm:$0xf]
      %v1730 = vld [vmem:[%s398 + $0x2c] sm:$0xf]
      %v1731 = vld [vmem:[%s398 + $0x30] sm:$0xf]
      %v1732 = vld [vmem:[%s398 + $0x34] sm:$0xf]
      %v1733 = vld [vmem:[%s398 + $0x38] sm:$0xf]
      %v1734 = vld [vmem:[%s398 + $0x3c] sm:$0xf]
      %v1735 = vlaneseq
      %v1736 = vshrl.u32 %v1735, 7
      %v1737 = vsub.s32 0, %v1736
      %v1738 = vrot.slane %v416, %v1737
      %v1755 = vunpack.c.l.b16 %v1719
      %v1756 = vunpack.c.l.b16 %v1720
      %v1757 = vunpack.c.l.b16 %v1721
      %v1758 = vunpack.c.l.b16 %v1722
      %v1759 = vunpack.c.l.b16 %v1723
      %v1760 = vunpack.c.l.b16 %v1724
      %v1761 = vunpack.c.l.b16 %v1725
      %v1762 = vunpack.c.l.b16 %v1726
      %v1763 = vunpack.c.l.b16 %v1727
      %v1764 = vunpack.c.l.b16 %v1728
      %v1765 = vunpack.c.l.b16 %v1729
      %v1766 = vunpack.c.l.b16 %v1730
      %v1767 = vunpack.c.l.b16 %v1731
      %v1768 = vunpack.c.l.b16 %v1732
      %v1769 = vunpack.c.l.b16 %v1733
      %v1770 = vunpack.c.l.b16 %v1734
      %v1771 = vpack.c.b16 %v1756, %v1755
      %v1772 = vpack.c.b16 %v1758, %v1757
      %v1773 = vpack.c.b16 %v1760, %v1759
      %v1774 = vpack.c.b16 %v1762, %v1761
      %v1775 = vpack.c.b16 %v1764, %v1763
      %v1776 = vpack.c.b16 %v1766, %v1765
      %v1777 = vpack.c.b16 %v1768, %v1767
      %v1778 = vpack.c.b16 %v1770, %v1769
      %1787 = vmatprep.subr.bf16.mxu0 0
      %1788 = vmatpush1.bf16.msra.mxu0 %v1771
      %1789 = vmatprep.subr.bf16.mxu0 0
      %1790 = vmatpush1.bf16.msra.mxu0 %v1772
      %1791 = vmatprep.subr.bf16.mxu0 0
      %1792 = vmatpush1.bf16.msra.mxu0 %v1773
      %1793 = vmatprep.subr.bf16.mxu0 0
      %1794 = vmatpush1.bf16.msra.mxu0 %v1774
      %1795 = vmatprep.subr.bf16.mxu0 0
      %1796 = vmatpush1.bf16.msra.mxu0 %v1775
      %1797 = vmatprep.subr.bf16.mxu0 0
      %1798 = vmatpush1.bf16.msra.mxu0 %v1776
      %1799 = vmatprep.subr.bf16.mxu0 0
      %1800 = vmatpush1.bf16.msra.mxu0 %v1777
      %1801 = vmatprep.subr.bf16.mxu0 0
      %1802 = vmatpush1.bf16.msra.mxu0 %v1778
      %1803 = vmatprep.subr.bf16.mxu0 0
      %1804 = vmatpush1.bf16.msra.mxu0 0
      %1805 = vmatprep.subr.bf16.mxu0 0
      %1806 = vmatpush1.bf16.msra.mxu0 0
      %1807 = vmatprep.subr.bf16.mxu0 0
      %1808 = vmatpush1.bf16.msra.mxu0 0
      %1809 = vmatprep.subr.bf16.mxu0 0
      %1810 = vmatpush1.bf16.msra.mxu0 0
      %1811 = vmatprep.subr.bf16.mxu0 0
      %1812 = vmatpush1.bf16.msra.mxu0 0
      %1813 = vmatprep.subr.bf16.mxu0 0
      %1814 = vmatpush1.bf16.msra.mxu0 0
      %1815 = vmatprep.subr.bf16.mxu0 0
      %1816 = vmatpush1.bf16.msra.mxu0 0
      %1817 = vmatprep.subr.bf16.mxu0 0
      %1818 = vmatpush1.bf16.msra.mxu0 0
      %1819 = vmatprep.mubr.bf16.mxu0 0
      %1820 = vmatmul.mubr.bf16.gmra.mrb[0].mxu0 %v1718
      %v1821 = vpop.f32.mrb[0].mxu0
      %v1822 = vadd.f32 %v1738, %v1821
      %v1823 = vpop.f32.mrb[0].mxu0
      %v1824 = vpop.f32.mrb[0].mxu0
      %v1825 = vadd.f32 %v1738, %v1824
      %v1826 = vpop.f32.mrb[0].mxu0
      %1827 = vdwg.mxu0
      %v1828 = vadd.f32 %v1592, %v1822
      %v1829 = vadd.f32 %v1593, %v1825
      %1830 = vst.msk [vmem:[%s8] sm:$0xff] %vm417, %v1828
      %1831 = vst.msk [vmem:[%s8 + $0x8] sm:$0xff] %vm417, %v1829
      // Predicated region
      $region57: #{text_transformer_forward.1} parent=51 // pred_check
        %p1832 = pneg %p235
      $region58: #{text_transformer_forward.1} parent=51 // pred_check_branch
        %1834 = sbr.rel (%p1832) target = $region60
      $region59: #{text_transformer_forward.1} parent=51 // pred_region
        _
      $region60: #{text_transformer_forward.1} parent=51 // pred_fallthru
        _
      // Predicated region
      $region61: #{text_transformer_forward.1} parent=51 // pred_check
        %p1835 = pneg %p235
      $region62: #{text_transformer_forward.1} parent=51 // pred_check_branch
        %1837 = sbr.rel (%p1835) target = $region64
      $region63: #{text_transformer_forward.1} parent=51 // pred_region
        _
      $region64: #{text_transformer_forward.1} parent=51 // pred_fallthru
        _
    $region52: #{text_transformer_forward.1} parent=5 // pred_fallthru
      _
    %p1838 = scmp.le.s32.totalorder 2, %s14
    // Predicated region
    $region65: #{text_transformer_forward.1} parent=5 // pred_check
      %p1839 = pneg %p1838
    $region66: #{text_transformer_forward.1} parent=5 // pred_check_branch
      %1841 = sbr.rel (%p1839) target = $region68
    $region67: #{text_transformer_forward.1} parent=5 // pred_region
      %s1842 = ssub.s32 %s14, 2
    $region68: #{text_transformer_forward.1} parent=5 // pred_fallthru
      _
  $region6: #{text_transformer_forward.1} parent=0 // loop_footer
    %s18 = sadd.s32 1, %s14
  $region7: #{text_transformer_forward.1} parent=0 // loop_footer_branch
    %13 = sbr.rel target = $region3
  $region8: #{text_transformer_forward.1} parent=0 // loop_exit
    _

</llo_original>
